<compile_context>
chip_gen: v7x
topology: tpu7x:2x2x1
jax: 0.10.0
libtpu: 0.0.40
codegen_flags: <defaults>
</compile_context>

<pallas_src>
import functools

import jax
import jax.numpy as jnp
from jax import lax
from jax.experimental import pallas as pl
from jax.experimental.pallas import tpu as pltpu


# ----------------------------- Pallas kernel ---------------------------------
def _gcn_kernel(x_ref, pool_ref, vecs_ref, wstk_ref, a_ref,   # inputs
                out_ref,                                      # output [HP, G]
                *scratch,
                n_real, num_classes, eps, a_resident):
    HP = x_ref.shape[0]          # padded channel dim (sublanes)
    NP = x_ref.shape[1]          # padded node dim (lanes)
    G = pool_ref.shape[1]        # number of graphs
    inv_n = 1.0 / float(n_real)

    # Node-validity mask along the lane (node) axis (NP may be padded past n_real).
    node_ids = lax.broadcasted_iota(jnp.int32, (1, NP), 1)
    mask = (node_ids < n_real).astype(jnp.float32)

    vecs = vecs_ref[...]         # [HP, 14] packed per-channel vectors

    def vcol(i):                 # [HP, 1] column vector
        return vecs[:, i:i + 1]

    def stats(h):
        # masked per-channel sum / sum-of-squares over real nodes
        hm = h * mask
        return (jnp.sum(hm, axis=1, keepdims=True),
                jnp.sum(hm * hm, axis=1, keepdims=True))

    def graph_norm(h, s1, s2, gamma, beta, ms):
        # batch=None in the torch forward -> stats over all (real) nodes globally.
        # var = E[(h - ms*mean)^2] computed from running sums (fused-stats friendly).
        mean = s1 * inv_n
        mu = ms * mean
        var = jnp.maximum(s2 * inv_n - 2.0 * mu * mean + mu * mu, 0.0)
        return gamma * (h - mu) * lax.rsqrt(var + eps) + beta

    def gn_w_matmul(h, s1, s2, w_idx, g_idx, b_idx, ms_idx):
        # z^T = W @ gn(h)^T  (bf16 MXU path, f32 accumulation)
        hn = graph_norm(h, s1, s2, vcol(g_idx), vcol(b_idx), vcol(ms_idx))
        z = jnp.dot(wstk_ref[w_idx], hn.astype(jnp.bfloat16),
                    preferred_element_type=jnp.float32)
        return z.astype(jnp.bfloat16)

    if a_resident:
        # ---------------- A_hat fully resident in VMEM (read from HBM once) --------
        def layer(h, s1, s2, w_idx, g_idx, b_idx, ms_idx, bias_idx):
            z = gn_w_matmul(h, s1, s2, w_idx, g_idx, b_idx, ms_idx)
            hh = jnp.dot(z, a_ref[...], preferred_element_type=jnp.float32)
            return jnp.maximum(hh + vcol(bias_idx), 0.0)

        x = x_ref[...].astype(jnp.float32)
        s1, s2 = stats(x)
        h = layer(x, s1, s2, 0, 0, 1, 2, 9)
        s1, s2 = stats(h)
        h = layer(h, s1, s2, 1, 3, 4, 5, 10)
        s1, s2 = stats(h)
        h = layer(h, s1, s2, 2, 6, 7, 8, 11)

        # global_mean_pool, channel-major: [HP, NP] @ [NP, G] -> [HP, G]
        pooled = jnp.dot(h, pool_ref[...], preferred_element_type=jnp.float32)

    else:
        # ---------------- streaming fallback: contiguous A tiles from HBM ----------
        h_ref, z_ref, a_buf, sem = scratch
        TN = a_buf.shape[2]
        num_tiles = a_ref.shape[0]          # a_ref is HBM [num_tiles, NP, TN]

        def a_fetch(t, slot):
            pltpu.make_async_copy(a_ref.at[t], a_buf.at[slot], sem.at[slot]).start()

        def a_wait(slot):
            pltpu.make_async_copy(a_ref.at[0], a_buf.at[slot], sem.at[slot]).wait()

        def layer(h, s1, s2, w_idx, g_idx, b_idx, ms_idx, bias_idx, do_pool):
            # Prefetch the first A tile *before* the GraphNorm + W matmul so the DMA
            # latency at the layer boundary is hidden behind compute.
            a_fetch(0, 0)
            z_ref[...] = gn_w_matmul(h, s1, s2, w_idx, g_idx, b_idx, ms_idx)
            bias = vcol(bias_idx)

            ns1 = jnp.zeros((HP, 1), jnp.float32)
            ns2 = jnp.zeros((HP, 1), jnp.float32)
            pooled = jnp.zeros((HP, G), jnp.float32)

            # TODO(synk): switch to lax.fori_loop (+pl.when) once num_tiles is large
            #             (> ~32) to avoid program bloat from static unrolling.
            for t in range(num_tiles):
                slot = t % 2
                a_wait(slot)
                if t + 1 < num_tiles:
                    a_fetch(t + 1, 1 - slot)
                tile = jnp.dot(z_ref[...], a_buf[slot],
                               preferred_element_type=jnp.float32)
                h_tile = jnp.maximum(tile + bias, 0.0)
                h_ref[:, t * TN:(t + 1) * TN] = h_tile
                # fused GraphNorm statistics for the *next* layer (masked)
                hm = h_tile * mask[:, t * TN:(t + 1) * TN]
                ns1 = ns1 + jnp.sum(hm, axis=1, keepdims=True)
                ns2 = ns2 + jnp.sum(hm * hm, axis=1, keepdims=True)
                if do_pool:
                    # fused global_mean_pool accumulation (last layer only)
                    pooled = pooled + jnp.dot(
                        h_tile, pool_ref[t * TN:(t + 1) * TN, :],
                        preferred_element_type=jnp.float32)
            return ns1, ns2, pooled

        x = x_ref[...].astype(jnp.float32)
        s1, s2 = stats(x)
        s1, s2, _ = layer(x, s1, s2, 0, 0, 1, 2, 9, False)
        s1, s2, _ = layer(h_ref[...], s1, s2, 1, 3, 4, 5, 10, False)
        _, _, pooled = layer(h_ref[...], s1, s2, 2, 6, 7, 8, 11, True)

    # TODO(synk): F.dropout(p=0.5, training=True) is stochastic; identity (eval) here.

    # dense -> relu, output, softmax over the class (sublane) axis.
    d = jnp.maximum(
        jnp.dot(wstk_ref[3].astype(jnp.float32), pooled,
                preferred_element_type=jnp.float32) + vcol(12), 0.0)
    logits = jnp.dot(wstk_ref[4].astype(jnp.float32), d,
                     preferred_element_type=jnp.float32) + vcol(13)

    row_ids = lax.broadcasted_iota(jnp.int32, (HP, 1), 0)
    logits = jnp.where(row_ids < num_classes, logits, -1e30)   # mask padded classes
    m = jnp.max(logits, axis=0, keepdims=True)
    e = jnp.exp(logits - m)
    out_ref[...] = e / jnp.sum(e, axis=0, keepdims=True)


# ----------------------------- JAX glue ---------------------------------------
def build_gcn_norm_adj(edge_index, num_nodes):
    """Dense D^-1/2 (A + I) D^-1/2 exactly matching torch_geometric gcn_norm."""
    src, dst = edge_index[0], edge_index[1]
    loop = jnp.arange(num_nodes, dtype=edge_index.dtype)
    src = jnp.concatenate([src, loop])
    dst = jnp.concatenate([dst, loop])
    a = jnp.zeros((num_nodes, num_nodes), jnp.float32).at[dst, src].add(1.0)
    deg = jnp.sum(a, axis=1)
    dinv = jnp.where(deg > 0, 1.0 / jnp.sqrt(deg), 0.0)
    return a * dinv[:, None] * dinv[None, :]


def build_mean_pool(batch, num_graphs, num_nodes):
    onehot = (batch[None, :] == jnp.arange(num_graphs)[:, None]).astype(jnp.float32)
    counts = jnp.maximum(jnp.sum(onehot, axis=1, keepdims=True), 1.0)
    return onehot / counts                           # [G, N]


def init_params(key, num_features, hidden, num_classes):
    ks = jax.random.split(key, 5)

    def glorot(k, shape):  # shape = (out_features, in_features)
        lim = jnp.sqrt(6.0 / (shape[0] + shape[1]))
        return jax.random.uniform(k, shape, jnp.float32, -lim, lim)

    return {
        # GraphNorm params (weight=1, bias=0, mean_scale=1 as in PyG init)
        "g0": jnp.ones((num_features,)), "b0": jnp.zeros((num_features,)),
        "ms0": jnp.ones((num_features,)),
        "g1": jnp.ones((hidden,)), "bt1": jnp.zeros((hidden,)), "ms1": jnp.ones((hidden,)),
        "g2": jnp.ones((hidden,)), "bt2": jnp.zeros((hidden,)), "ms2": jnp.ones((hidden,)),
        # GCNConv weights ([out, in], glorot) + zero bias
        "w1": glorot(ks[0], (hidden, num_features)), "bb1": jnp.zeros((hidden,)),
        "w2": glorot(ks[1], (hidden, hidden)),       "bb2": jnp.zeros((hidden,)),
        "w3": glorot(ks[2], (hidden, hidden)),       "bb3": jnp.zeros((hidden,)),
        # Linear layers ([out, in])
        "wd": glorot(ks[3], (hidden, hidden)),       "bd": jnp.zeros((hidden,)),
        "wo": glorot(ks[4], (num_classes, hidden)),  "bo": jnp.zeros((num_classes,)),
    }


def _round_up(v, m):
    return ((v + m - 1) // m) * m


def _vmem_capacity_bytes():
    # Clamp budgets to the real chip capacity (64 MiB on v7x, 128 MiB on v5e/v6e).
    try:
        return int(pltpu.get_tpu_info().vmem_capacity_bytes)
    except Exception:
        return 64 * 1024 * 1024   # conservative fallback (v7x per-TC VMEM)


@functools.partial(jax.jit, static_argnames=("num_graphs",))
def gcn_forward(x, edge_index, batch, params, num_graphs):
    n, f = x.shape
    hidden = params["w2"].shape[0]
    num_classes = params["wo"].shape[0]
    G = num_graphs

    HP = _round_up(max(f, hidden, num_classes), 8)   # channel (sublane) padding
    NP = _round_up(n, 128)                           # node (lane) padding
    lane = 128

    # Graph structure as dense operators (padded; padded rows/cols are zero).
    a = build_gcn_norm_adj(edge_index, n)
    a_pad = jnp.zeros((NP, NP), jnp.float32).at[:n, :n].set(a).astype(jnp.bfloat16)
    pool = build_mean_pool(batch, G, n)                          # [G, n]
    pool_t = jnp.zeros((NP, G), jnp.float32).at[:n, :].set(pool.T)

    # Channel-major, padded node features (bf16 -> halves VMEM, fast MXU path).
    x_t = jnp.zeros((HP, NP), jnp.bfloat16).at[:f, :n].set(x.T.astype(jnp.bfloat16))

    # Pack per-channel vectors into one [HP, 14] f32 operand.
    def vcol(v, pad=0.0):
        return jnp.full((HP,), pad, jnp.float32).at[:v.shape[0]].set(
            v.astype(jnp.float32))

    vecs = jnp.stack([
        vcol(params["g0"], 1.0), vcol(params["b0"]), vcol(params["ms0"], 1.0),
        vcol(params["g1"], 1.0), vcol(params["bt1"]), vcol(params["ms1"], 1.0),
        vcol(params["g2"], 1.0), vcol(params["bt2"]), vcol(params["ms2"], 1.0),
        vcol(params["bb1"]), vcol(params["bb2"]), vcol(params["bb3"]),
        vcol(params["bd"]), vcol(params["bo"]),
    ], axis=1)                                                   # [HP, 14]

    # Pack the five weight matrices ([out, in], zero-padded) into one bf16 stack.
    def pad_w(w):
        o, i = w.shape
        return jnp.zeros((HP, HP), jnp.float32).at[:o, :i].set(w)

    w_stack = jnp.stack([pad_w(params["w1"]), pad_w(params["w2"]),
                         pad_w(params["w3"]), pad_w(params["wd"]),
                         pad_w(params["wo"])]).astype(jnp.bfloat16)  # [5, HP, HP]

    # ------------------------- VMEM budgeting (trace-time) ----------------------
    vmem_cap = _vmem_capacity_bytes()
    headroom = 16 << 20
    base_bytes = (HP * NP * 2                 # x (bf16)
                  + NP * max(G, lane) * 4     # pool
                  + HP * lane * 4             # vecs
                  + 5 * HP * lane * 2         # w_stack (lane padded, bf16)
                  + HP * lane * 4)            # out
    temp_bytes = 8 * HP * NP * 4              # graph_norm / dot temporaries (estimate)
    a_bytes = NP * NP * 2                     # full A_hat in bf16

    a_resident = (base_bytes + a_bytes + temp_bytes + headroom
                  <= vmem_cap - (8 << 20))

    vmem_spec = pl.BlockSpec(memory_space=pltpu.MemorySpace.VMEM)

    if a_resident:
        # A_hat lives in VMEM for the whole kernel: one HBM read instead of three.
        a_arg = a_pad
        in_specs = [vmem_spec, vmem_spec, vmem_spec, vmem_spec, vmem_spec]
        scratch_shapes = []
        vmem_needed = base_bytes + a_bytes + temp_bytes
    else:
        # Streaming fallback: pre-tile A into contiguous [num_tiles, NP, TN] slabs.
        scratch_fixed = HP * NP * 4 + HP * NP * 2        # h (f32) + z (bf16)
        budget = (vmem_cap - (8 << 20) - headroom
                  - base_bytes - temp_bytes - scratch_fixed)
        TN = 128
        for cand in (2048, 1024, 512, 256, 128):
            if NP % cand == 0 and 2 * NP * cand * 2 <= budget:
                TN = cand
                break
        num_tiles = NP // TN
        a_arg = a_pad.reshape(NP, num_tiles, TN).transpose(1, 0, 2)  # [T, NP, TN]
        in_specs = [vmem_spec, vmem_spec, vmem_spec, vmem_spec,
                    pl.BlockSpec(memory_space=pl.ANY)]               # A stays in HBM
        scratch_shapes = [
            pltpu.VMEM((HP, NP), jnp.float32),    # h (node features)
            pltpu.VMEM((HP, NP), jnp.bfloat16),   # z = W @ gn(h)^T
            pltpu.VMEM((2, NP, TN), jnp.bfloat16),  # A tile double buffer
            pltpu.SemaphoreType.DMA((2,)),
        ]
        vmem_needed = base_bytes + scratch_fixed + 2 * NP * TN * 2 + temp_bytes

    vmem_limit = int(min(vmem_needed + headroom, vmem_cap - (4 << 20)))

    kernel = functools.partial(_gcn_kernel, n_real=n, num_classes=num_classes,
                               eps=1e-5, a_resident=a_resident)

    res = pl.pallas_call(
        kernel,
        out_shape=jax.ShapeDtypeStruct((HP, G), jnp.float32),
        in_specs=in_specs,
        out_specs=vmem_spec,
        scratch_shapes=scratch_shapes,
        compiler_params=pltpu.CompilerParams(vmem_limit_bytes=vmem_limit),
    )(x_t, pool_t, vecs, w_stack, a_arg)

    return res[:num_classes, :].T                                # [G, C]


# ----------------------------- Demo -------------------------------------------
if __name__ == "__main__":
    NUM_NODES = 32          # 2 graphs x 16 nodes
    NUM_FEATURES = 16
    HIDDEN = 32
    NUM_CLASSES = 4
    NUM_GRAPHS = 2
    NODES_PER_GRAPH = NUM_NODES // NUM_GRAPHS

    key = jax.random.PRNGKey(0)
    kx, kp = jax.random.split(key)

    x = jax.random.normal(kx, (NUM_NODES, NUM_FEATURES), jnp.float32)

    # deterministic undirected ring within each graph
    srcs, dsts = [], []
    for g in range(NUM_GRAPHS):
        base = g * NODES_PER_GRAPH
        for i in range(NODES_PER_GRAPH):
            a = base + i
            b = base + (i + 1) % NODES_PER_GRAPH
            srcs += [a, b]
            dsts += [b, a]
    edge_index = jnp.array([srcs, dsts], dtype=jnp.int32)   # [2, 64]

    batch = jnp.repeat(jnp.arange(NUM_GRAPHS, dtype=jnp.int32), NODES_PER_GRAPH)

    params = init_params(kp, NUM_FEATURES, HIDDEN, NUM_CLASSES)

    out = gcn_forward(x, edge_index, batch, params, num_graphs=NUM_GRAPHS)
    out = jax.block_until_ready(out)

    assert out.shape == (NUM_GRAPHS, NUM_CLASSES)
    assert bool(jnp.all(jnp.isfinite(out)))
    # softmax rows sum to 1
    assert bool(jnp.allclose(jnp.sum(out, axis=1), 1.0, atol=1e-5))
    print("KERNEL_OK")
</pallas_src>

<mosaic_0001>
module attributes {stable_mosaic.version = 11 : i64} {
  func.func private @main(%arg0: i32) attributes {dimension_semantics = [#tpu.dimension_semantics<core_parallel>], iteration_bounds = array<i64: 2>, tpu.core_type = #tpu.core_type<sc_scalar_subcore>, window_params = []} {
    return
  }
}

module attributes {stable_mosaic.version = 11 : i64} {
  func.func private @main(%arg0: i32) attributes {dimension_semantics = [#tpu.dimension_semantics<core_parallel>], iteration_bounds = array<i64: 2>, tpu.core_type = #tpu.core_type<sc_scalar_subcore>, window_params = []} {
    return
  }
}

module attributes {stable_mosaic.version = 11 : i64} {
  func.func @_gcn_kernel(%arg0: memref<32x128xbf16, #tpu.memory_space<vmem>>, %arg1: memref<128x2xf32, #tpu.memory_space<vmem>>, %arg2: memref<32x14xf32, #tpu.memory_space<vmem>>, %arg3: memref<5x32x32xbf16, #tpu.memory_space<vmem>>, %arg4: memref<128x128xbf16, #tpu.memory_space<vmem>>, %arg5: memref<32x2xf32, #tpu.memory_space<vmem>>) attributes {dimension_semantics = [], scalar_prefetch = 0 : i64, scratch_operands = 0 : i64, tpu.core_type = #tpu.core_type<tc>} {
    %0 = tpu.iota {dimensions = array<i32: 1>} : vector<1x128xi32>
    %c32_i32 = arith.constant 32 : i32
    %1 = vector.broadcast %c32_i32 : i32 to vector<1x128xi32>
    %2 = arith.cmpi slt, %0, %1 : vector<1x128xi32>
    %3 = arith.extui %2 : vector<1x128xi1> to vector<1x128xi32>
    %4 = arith.sitofp %3 : vector<1x128xi32> to vector<1x128xf32>
    %c0 = arith.constant 0 : index
    %c0_0 = arith.constant 0 : index
    %5 = vector.load %arg2[%c0, %c0_0] : memref<32x14xf32, #tpu.memory_space<vmem>>, vector<32x14xf32>
    %c0_1 = arith.constant 0 : index
    %c0_2 = arith.constant 0 : index
    %6 = vector.load %arg0[%c0_1, %c0_2] : memref<32x128xbf16, #tpu.memory_space<vmem>>, vector<32x128xbf16>
    %7 = arith.extf %6 : vector<32x128xbf16> to vector<32x128xf32>
    %8 = vector.broadcast %4 : vector<1x128xf32> to vector<32x128xf32>
    %9 = arith.mulf %7, %8 : vector<32x128xf32>
    %cst = arith.constant dense<0.000000e+00> : vector<32xf32>
    %10 = vector.multi_reduction <add>, %9, %cst [1] : vector<32x128xf32> to vector<32xf32>
    %11 = vector.shape_cast %10 : vector<32xf32> to vector<32x1xf32>
    %12 = arith.mulf %9, %9 : vector<32x128xf32>
    %cst_3 = arith.constant dense<0.000000e+00> : vector<32xf32>
    %13 = vector.multi_reduction <add>, %12, %cst_3 [1] : vector<32x128xf32> to vector<32xf32>
    %14 = vector.shape_cast %13 : vector<32xf32> to vector<32x1xf32>
    %15 = vector.extract_strided_slice %5 {offsets = [0, 0], sizes = [32, 1], strides = [1, 1]} : vector<32x14xf32> to vector<32x1xf32>
    %16 = vector.extract_strided_slice %5 {offsets = [0, 1], sizes = [32, 1], strides = [1, 1]} : vector<32x14xf32> to vector<32x1xf32>
    %17 = vector.extract_strided_slice %5 {offsets = [0, 2], sizes = [32, 1], strides = [1, 1]} : vector<32x14xf32> to vector<32x1xf32>
    %cst_4 = arith.constant 3.125000e-02 : f32
    %18 = vector.broadcast %cst_4 : f32 to vector<32x1xf32>
    %19 = arith.mulf %11, %18 : vector<32x1xf32>
    %20 = arith.mulf %17, %19 : vector<32x1xf32>
    %cst_5 = arith.constant 3.125000e-02 : f32
    %21 = vector.broadcast %cst_5 : f32 to vector<32x1xf32>
    %22 = arith.mulf %14, %21 : vector<32x1xf32>
    %cst_6 = arith.constant 2.000000e+00 : f32
    %23 = vector.broadcast %cst_6 : f32 to vector<32x1xf32>
    %24 = arith.mulf %23, %20 : vector<32x1xf32>
    %25 = arith.mulf %24, %19 : vector<32x1xf32>
    %26 = arith.subf %22, %25 : vector<32x1xf32>
    %27 = arith.mulf %20, %20 : vector<32x1xf32>
    %28 = arith.addf %26, %27 : vector<32x1xf32>
    %cst_7 = arith.constant 0.000000e+00 : f32
    %29 = vector.broadcast %cst_7 : f32 to vector<32x1xf32>
    %30 = arith.maximumf %28, %29 : vector<32x1xf32>
    %31 = vector.broadcast %20 : vector<32x1xf32> to vector<32x128xf32>
    %32 = arith.subf %7, %31 : vector<32x128xf32>
    %33 = vector.broadcast %15 : vector<32x1xf32> to vector<32x128xf32>
    %34 = arith.mulf %33, %32 : vector<32x128xf32>
    %cst_8 = arith.constant 9.99999974E-6 : f32
    %35 = vector.broadcast %cst_8 : f32 to vector<32x1xf32>
    %36 = arith.addf %30, %35 : vector<32x1xf32>
    %37 = math.rsqrt %36 : vector<32x1xf32>
    %38 = vector.broadcast %37 : vector<32x1xf32> to vector<32x128xf32>
    %39 = arith.mulf %34, %38 : vector<32x128xf32>
    %40 = vector.broadcast %16 : vector<32x1xf32> to vector<32x128xf32>
    %41 = arith.addf %39, %40 : vector<32x128xf32>
    %c0_9 = arith.constant 0 : index
    %c0_10 = arith.constant 0 : index
    %c0_11 = arith.constant 0 : index
    %42 = vector.load %arg3[%c0_9, %c0_10, %c0_11] : memref<5x32x32xbf16, #tpu.memory_space<vmem>>, vector<1x32x32xbf16>
    %43 = vector.shape_cast %42 : vector<1x32x32xbf16> to vector<32x32xbf16>
    %44 = arith.truncf %41 : vector<32x128xf32> to vector<32x128xbf16>
    %cst_12 = arith.constant dense<0.000000e+00> : vector<32x128xf32>
    %45 = tpu.matmul %43, %44, %cst_12 {dimension_numbers = #tpu.dot_dimension_numbers<[1], [0], [0], [1], [0, 0, 1, 1], [], []>} : vector<32x32xbf16>, vector<32x128xbf16>, vector<32x128xf32> -> vector<32x128xf32>
    %46 = arith.truncf %45 : vector<32x128xf32> to vector<32x128xbf16>
    %c0_13 = arith.constant 0 : index
    %c0_14 = arith.constant 0 : index
    %47 = vector.load %arg4[%c0_13, %c0_14] : memref<128x128xbf16, #tpu.memory_space<vmem>>, vector<128x128xbf16>
    %cst_15 = arith.constant dense<0.000000e+00> : vector<32x128xf32>
    %48 = tpu.matmul %46, %47, %cst_15 {dimension_numbers = #tpu.dot_dimension_numbers<[1], [0], [0], [1], [0, 0, 1, 1], [], []>} : vector<32x128xbf16>, vector<128x128xbf16>, vector<32x128xf32> -> vector<32x128xf32>
    %49 = vector.extract_strided_slice %5 {offsets = [0, 9], sizes = [32, 1], strides = [1, 1]} : vector<32x14xf32> to vector<32x1xf32>
    %50 = vector.broadcast %49 : vector<32x1xf32> to vector<32x128xf32>
    %51 = arith.addf %48, %50 : vector<32x128xf32>
    %cst_16 = arith.constant 0.000000e+00 : f32
    %52 = vector.broadcast %cst_16 : f32 to vector<32x128xf32>
    %53 = arith.maximumf %51, %52 : vector<32x128xf32>
    %54 = vector.broadcast %4 : vector<1x128xf32> to vector<32x128xf32>
    %55 = arith.mulf %53, %54 : vector<32x128xf32>
    %cst_17 = arith.constant dense<0.000000e+00> : vector<32xf32>
    %56 = vector.multi_reduction <add>, %55, %cst_17 [1] : vector<32x128xf32> to vector<32xf32>
    %57 = vector.shape_cast %56 : vector<32xf32> to vector<32x1xf32>
    %58 = arith.mulf %55, %55 : vector<32x128xf32>
    %cst_18 = arith.constant dense<0.000000e+00> : vector<32xf32>
    %59 = vector.multi_reduction <add>, %58, %cst_18 [1] : vector<32x128xf32> to vector<32xf32>
    %60 = vector.shape_cast %59 : vector<32xf32> to vector<32x1xf32>
    %61 = vector.extract_strided_slice %5 {offsets = [0, 3], sizes = [32, 1], strides = [1, 1]} : vector<32x14xf32> to vector<32x1xf32>
    %62 = vector.extract_strided_slice %5 {offsets = [0, 4], sizes = [32, 1], strides = [1, 1]} : vector<32x14xf32> to vector<32x1xf32>
    %63 = vector.extract_strided_slice %5 {offsets = [0, 5], sizes = [32, 1], strides = [1, 1]} : vector<32x14xf32> to vector<32x1xf32>
    %cst_19 = arith.constant 3.125000e-02 : f32
    %64 = vector.broadcast %cst_19 : f32 to vector<32x1xf32>
    %65 = arith.mulf %57, %64 : vector<32x1xf32>
    %66 = arith.mulf %63, %65 : vector<32x1xf32>
    %cst_20 = arith.constant 3.125000e-02 : f32
    %67 = vector.broadcast %cst_20 : f32 to vector<32x1xf32>
    %68 = arith.mulf %60, %67 : vector<32x1xf32>
    %cst_21 = arith.constant 2.000000e+00 : f32
    %69 = vector.broadcast %cst_21 : f32 to vector<32x1xf32>
    %70 = arith.mulf %69, %66 : vector<32x1xf32>
    %71 = arith.mulf %70, %65 : vector<32x1xf32>
    %72 = arith.subf %68, %71 : vector<32x1xf32>
    %73 = arith.mulf %66, %66 : vector<32x1xf32>
    %74 = arith.addf %72, %73 : vector<32x1xf32>
    %cst_22 = arith.constant 0.000000e+00 : f32
    %75 = vector.broadcast %cst_22 : f32 to vector<32x1xf32>
    %76 = arith.maximumf %74, %75 : vector<32x1xf32>
    %77 = vector.broadcast %66 : vector<32x1xf32> to vector<32x128xf32>
    %78 = arith.subf %53, %77 : vector<32x128xf32>
    %79 = vector.broadcast %61 : vector<32x1xf32> to vector<32x128xf32>
    %80 = arith.mulf %79, %78 : vector<32x128xf32>
    %cst_23 = arith.constant 9.99999974E-6 : f32
    %81 = vector.broadcast %cst_23 : f32 to vector<32x1xf32>
    %82 = arith.addf %76, %81 : vector<32x1xf32>
    %83 = math.rsqrt %82 : vector<32x1xf32>
    %84 = vector.broadcast %83 : vector<32x1xf32> to vector<32x128xf32>
    %85 = arith.mulf %80, %84 : vector<32x128xf32>
    %86 = vector.broadcast %62 : vector<32x1xf32> to vector<32x128xf32>
    %87 = arith.addf %85, %86 : vector<32x128xf32>
    %c1 = arith.constant 1 : index
    %c0_24 = arith.constant 0 : index
    %c0_25 = arith.constant 0 : index
    %88 = vector.load %arg3[%c1, %c0_24, %c0_25] : memref<5x32x32xbf16, #tpu.memory_space<vmem>>, vector<1x32x32xbf16>
    %89 = vector.shape_cast %88 : vector<1x32x32xbf16> to vector<32x32xbf16>
    %90 = arith.truncf %87 : vector<32x128xf32> to vector<32x128xbf16>
    %cst_26 = arith.constant dense<0.000000e+00> : vector<32x128xf32>
    %91 = tpu.matmul %89, %90, %cst_26 {dimension_numbers = #tpu.dot_dimension_numbers<[1], [0], [0], [1], [0, 0, 1, 1], [], []>} : vector<32x32xbf16>, vector<32x128xbf16>, vector<32x128xf32> -> vector<32x128xf32>
    %92 = arith.truncf %91 : vector<32x128xf32> to vector<32x128xbf16>
    %c0_27 = arith.constant 0 : index
    %c0_28 = arith.constant 0 : index
    %93 = vector.load %arg4[%c0_27, %c0_28] : memref<128x128xbf16, #tpu.memory_space<vmem>>, vector<128x128xbf16>
    %cst_29 = arith.constant dense<0.000000e+00> : vector<32x128xf32>
    %94 = tpu.matmul %92, %93, %cst_29 {dimension_numbers = #tpu.dot_dimension_numbers<[1], [0], [0], [1], [0, 0, 1, 1], [], []>} : vector<32x128xbf16>, vector<128x128xbf16>, vector<32x128xf32> -> vector<32x128xf32>
    %95 = vector.extract_strided_slice %5 {offsets = [0, 10], sizes = [32, 1], strides = [1, 1]} : vector<32x14xf32> to vector<32x1xf32>
    %96 = vector.broadcast %95 : vector<32x1xf32> to vector<32x128xf32>
    %97 = arith.addf %94, %96 : vector<32x128xf32>
    %cst_30 = arith.constant 0.000000e+00 : f32
    %98 = vector.broadcast %cst_30 : f32 to vector<32x128xf32>
    %99 = arith.maximumf %97, %98 : vector<32x128xf32>
    %100 = vector.broadcast %4 : vector<1x128xf32> to vector<32x128xf32>
    %101 = arith.mulf %99, %100 : vector<32x128xf32>
    %cst_31 = arith.constant dense<0.000000e+00> : vector<32xf32>
    %102 = vector.multi_reduction <add>, %101, %cst_31 [1] : vector<32x128xf32> to vector<32xf32>
    %103 = vector.shape_cast %102 : vector<32xf32> to vector<32x1xf32>
    %104 = arith.mulf %101, %101 : vector<32x128xf32>
    %cst_32 = arith.constant dense<0.000000e+00> : vector<32xf32>
    %105 = vector.multi_reduction <add>, %104, %cst_32 [1] : vector<32x128xf32> to vector<32xf32>
    %106 = vector.shape_cast %105 : vector<32xf32> to vector<32x1xf32>
    %107 = vector.extract_strided_slice %5 {offsets = [0, 6], sizes = [32, 1], strides = [1, 1]} : vector<32x14xf32> to vector<32x1xf32>
    %108 = vector.extract_strided_slice %5 {offsets = [0, 7], sizes = [32, 1], strides = [1, 1]} : vector<32x14xf32> to vector<32x1xf32>
    %109 = vector.extract_strided_slice %5 {offsets = [0, 8], sizes = [32, 1], strides = [1, 1]} : vector<32x14xf32> to vector<32x1xf32>
    %cst_33 = arith.constant 3.125000e-02 : f32
    %110 = vector.broadcast %cst_33 : f32 to vector<32x1xf32>
    %111 = arith.mulf %103, %110 : vector<32x1xf32>
    %112 = arith.mulf %109, %111 : vector<32x1xf32>
    %cst_34 = arith.constant 3.125000e-02 : f32
    %113 = vector.broadcast %cst_34 : f32 to vector<32x1xf32>
    %114 = arith.mulf %106, %113 : vector<32x1xf32>
    %cst_35 = arith.constant 2.000000e+00 : f32
    %115 = vector.broadcast %cst_35 : f32 to vector<32x1xf32>
    %116 = arith.mulf %115, %112 : vector<32x1xf32>
    %117 = arith.mulf %116, %111 : vector<32x1xf32>
    %118 = arith.subf %114, %117 : vector<32x1xf32>
    %119 = arith.mulf %112, %112 : vector<32x1xf32>
    %120 = arith.addf %118, %119 : vector<32x1xf32>
    %cst_36 = arith.constant 0.000000e+00 : f32
    %121 = vector.broadcast %cst_36 : f32 to vector<32x1xf32>
    %122 = arith.maximumf %120, %121 : vector<32x1xf32>
    %123 = vector.broadcast %112 : vector<32x1xf32> to vector<32x128xf32>
    %124 = arith.subf %99, %123 : vector<32x128xf32>
    %125 = vector.broadcast %107 : vector<32x1xf32> to vector<32x128xf32>
    %126 = arith.mulf %125, %124 : vector<32x128xf32>
    %cst_37 = arith.constant 9.99999974E-6 : f32
    %127 = vector.broadcast %cst_37 : f32 to vector<32x1xf32>
    %128 = arith.addf %122, %127 : vector<32x1xf32>
    %129 = math.rsqrt %128 : vector<32x1xf32>
    %130 = vector.broadcast %129 : vector<32x1xf32> to vector<32x128xf32>
    %131 = arith.mulf %126, %130 : vector<32x128xf32>
    %132 = vector.broadcast %108 : vector<32x1xf32> to vector<32x128xf32>
    %133 = arith.addf %131, %132 : vector<32x128xf32>
    %c2 = arith.constant 2 : index
    %c0_38 = arith.constant 0 : index
    %c0_39 = arith.constant 0 : index
    %134 = vector.load %arg3[%c2, %c0_38, %c0_39] : memref<5x32x32xbf16, #tpu.memory_space<vmem>>, vector<1x32x32xbf16>
    %135 = vector.shape_cast %134 : vector<1x32x32xbf16> to vector<32x32xbf16>
    %136 = arith.truncf %133 : vector<32x128xf32> to vector<32x128xbf16>
    %cst_40 = arith.constant dense<0.000000e+00> : vector<32x128xf32>
    %137 = tpu.matmul %135, %136, %cst_40 {dimension_numbers = #tpu.dot_dimension_numbers<[1], [0], [0], [1], [0, 0, 1, 1], [], []>} : vector<32x32xbf16>, vector<32x128xbf16>, vector<32x128xf32> -> vector<32x128xf32>
    %138 = arith.truncf %137 : vector<32x128xf32> to vector<32x128xbf16>
    %c0_41 = arith.constant 0 : index
    %c0_42 = arith.constant 0 : index
    %139 = vector.load %arg4[%c0_41, %c0_42] : memref<128x128xbf16, #tpu.memory_space<vmem>>, vector<128x128xbf16>
    %cst_43 = arith.constant dense<0.000000e+00> : vector<32x128xf32>
    %140 = tpu.matmul %138, %139, %cst_43 {dimension_numbers = #tpu.dot_dimension_numbers<[1], [0], [0], [1], [0, 0, 1, 1], [], []>} : vector<32x128xbf16>, vector<128x128xbf16>, vector<32x128xf32> -> vector<32x128xf32>
    %141 = vector.extract_strided_slice %5 {offsets = [0, 11], sizes = [32, 1], strides = [1, 1]} : vector<32x14xf32> to vector<32x1xf32>
    %142 = vector.broadcast %141 : vector<32x1xf32> to vector<32x128xf32>
    %143 = arith.addf %140, %142 : vector<32x128xf32>
    %cst_44 = arith.constant 0.000000e+00 : f32
    %144 = vector.broadcast %cst_44 : f32 to vector<32x128xf32>
    %145 = arith.maximumf %143, %144 : vector<32x128xf32>
    %c0_45 = arith.constant 0 : index
    %c0_46 = arith.constant 0 : index
    %146 = vector.load %arg1[%c0_45, %c0_46] : memref<128x2xf32, #tpu.memory_space<vmem>>, vector<128x2xf32>
    %cst_47 = arith.constant dense<0.000000e+00> : vector<32x2xf32>
    %147 = tpu.matmul %145, %146, %cst_47 {dimension_numbers = #tpu.dot_dimension_numbers<[1], [0], [0], [1], [0, 0, 1, 1], [], []>} : vector<32x128xf32>, vector<128x2xf32>, vector<32x2xf32> -> vector<32x2xf32>
    %c3 = arith.constant 3 : index
    %c0_48 = arith.constant 0 : index
    %c0_49 = arith.constant 0 : index
    %148 = vector.load %arg3[%c3, %c0_48, %c0_49] : memref<5x32x32xbf16, #tpu.memory_space<vmem>>, vector<1x32x32xbf16>
    %149 = vector.shape_cast %148 : vector<1x32x32xbf16> to vector<32x32xbf16>
    %150 = arith.extf %149 : vector<32x32xbf16> to vector<32x32xf32>
    %cst_50 = arith.constant dense<0.000000e+00> : vector<32x2xf32>
    %151 = tpu.matmul %150, %147, %cst_50 {dimension_numbers = #tpu.dot_dimension_numbers<[1], [0], [0], [1], [0, 0, 1, 1], [], []>} : vector<32x32xf32>, vector<32x2xf32>, vector<32x2xf32> -> vector<32x2xf32>
    %152 = vector.extract_strided_slice %5 {offsets = [0, 12], sizes = [32, 1], strides = [1, 1]} : vector<32x14xf32> to vector<32x1xf32>
    %153 = vector.broadcast %152 : vector<32x1xf32> to vector<32x2xf32>
    %154 = arith.addf %151, %153 : vector<32x2xf32>
    %cst_51 = arith.constant 0.000000e+00 : f32
    %155 = vector.broadcast %cst_51 : f32 to vector<32x2xf32>
    %156 = arith.maximumf %154, %155 : vector<32x2xf32>
    %c4 = arith.constant 4 : index
    %c0_52 = arith.constant 0 : index
    %c0_53 = arith.constant 0 : index
    %157 = vector.load %arg3[%c4, %c0_52, %c0_53] : memref<5x32x32xbf16, #tpu.memory_space<vmem>>, vector<1x32x32xbf16>
    %158 = vector.shape_cast %157 : vector<1x32x32xbf16> to vector<32x32xbf16>
    %159 = arith.extf %158 : vector<32x32xbf16> to vector<32x32xf32>
    %cst_54 = arith.constant dense<0.000000e+00> : vector<32x2xf32>
    %160 = tpu.matmul %159, %156, %cst_54 {dimension_numbers = #tpu.dot_dimension_numbers<[1], [0], [0], [1], [0, 0, 1, 1], [], []>} : vector<32x32xf32>, vector<32x2xf32>, vector<32x2xf32> -> vector<32x2xf32>
    %161 = vector.extract_strided_slice %5 {offsets = [0, 13], sizes = [32, 1], strides = [1, 1]} : vector<32x14xf32> to vector<32x1xf32>
    %162 = vector.broadcast %161 : vector<32x1xf32> to vector<32x2xf32>
    %163 = arith.addf %160, %162 : vector<32x2xf32>
    %164 = tpu.iota {dimensions = array<i32: 0>} : vector<32x1xi32>
    %c4_i32 = arith.constant 4 : i32
    %165 = vector.broadcast %c4_i32 : i32 to vector<32x1xi32>
    %166 = arith.cmpi slt, %164, %165 : vector<32x1xi32>
    %cst_55 = arith.constant -1.000000e+30 : f32
    %167 = vector.shape_cast %166 : vector<32x1xi1> to vector<32x1xi1>
    %168 = vector.broadcast %167 : vector<32x1xi1> to vector<32x2xi1>
    %169 = vector.broadcast %cst_55 : f32 to vector<32x2xf32>
    %170 = arith.select %168, %163, %169 : vector<32x2xi1>, vector<32x2xf32>
    %cst_56 = arith.constant dense<0xFF800000> : vector<2xf32>
    %171 = vector.multi_reduction <maximumf>, %170, %cst_56 [0] : vector<32x2xf32> to vector<2xf32>
    %172 = vector.shape_cast %171 : vector<2xf32> to vector<1x2xf32>
    %173 = vector.broadcast %172 : vector<1x2xf32> to vector<32x2xf32>
    %174 = arith.subf %170, %173 : vector<32x2xf32>
    %175 = math.exp %174 : vector<32x2xf32>
    %cst_57 = arith.constant dense<0.000000e+00> : vector<2xf32>
    %176 = vector.multi_reduction <add>, %175, %cst_57 [0] : vector<32x2xf32> to vector<2xf32>
    %177 = vector.shape_cast %176 : vector<2xf32> to vector<1x2xf32>
    %178 = vector.broadcast %177 : vector<1x2xf32> to vector<32x2xf32>
    %179 = arith.divf %175, %178 : vector<32x2xf32>
    %c0_58 = arith.constant 0 : index
    %c0_59 = arith.constant 0 : index
    %180 = vector.load %arg5[%c0_58, %c0_59] : memref<32x2xf32, #tpu.memory_space<vmem>>, vector<32x2xf32>
    tpu.vector_store %arg5[%c0_58, %c0_59], %179 {strides = array<i32>} : memref<32x2xf32, #tpu.memory_space<vmem>>, vector<32x2xf32>,
    return
  }
}

</mosaic_0001>

<llo_original>
// kernel: gcn_forward.1
$region0: #{gcn_forward.1}
  #allocation0 [shape = 'u32[]', space=smem, size = 0x4, offset = 0x4, fixed_abs, tag = 'smem constant byte address 0x4 - core index']
  #allocation1 [shape = 'u32[144,128]{1,0:T(1,128)}', space=vmem, size = 0x12000, scoped, tag = 'internal scratch']
  %s0 = inlined_call_operand.vmem [shape: bf16[32,128], index: 0, kind: input, shape index: {}]
  %s1 = inlined_call_operand.vmem [shape: f32[128,2], index: 1, kind: input, shape index: {}]
  %s2 = inlined_call_operand.vmem [shape: f32[32,14], index: 2, kind: input, shape index: {}]
  %s3 = inlined_call_operand.vmem [shape: bf16[5,32,32], index: 3, kind: input, shape index: {}]
  %s4 = inlined_call_operand.vmem [shape: bf16[128,128], index: 4, kind: input, shape index: {}]
  %s5 = inlined_call_operand.vmem [shape: f32[32,2], index: 5, kind: output, shape index: {}]
  %s6 = sld [smem:[#allocation0]]
  $region30: #{gcn_forward.1} parent=0
    _
  %s8 = ssub.s32 1, %s6
  %s9 = scalar_select 0, %s8, %s6
  // Predicated region
  $region2: #{gcn_forward.1} parent=0 // pred_check
    _
  $region3: #{gcn_forward.1} parent=0 // pred_check_branch
    %11 = sbr.rel (0) target = $region5
  $region4: #{gcn_forward.1} parent=0 // pred_region
    _
  $region5: #{gcn_forward.1} parent=0 // pred_fallthru
    _
  // Predicated region
  $region6: #{gcn_forward.1} parent=0 // pred_check
    _
  $region7: #{gcn_forward.1} parent=0 // pred_check_branch
    %13 = sbr.rel (0) target = $region9
  $region8: #{gcn_forward.1} parent=0 // pred_region
    _
  $region9: #{gcn_forward.1} parent=0 // pred_fallthru
    _
  // Predicated region
  $region10: #{gcn_forward.1} parent=0 // pred_check
    _
  $region11: #{gcn_forward.1} parent=0 // pred_check_branch
    %15 = sbr.rel (0) target = $region13
  $region12: #{gcn_forward.1} parent=0 // pred_region
    _
  $region13: #{gcn_forward.1} parent=0 // pred_fallthru
    _
  // Predicated region
  $region14: #{gcn_forward.1} parent=0 // pred_check
    _
  $region15: #{gcn_forward.1} parent=0 // pred_check_branch
    %17 = sbr.rel (0) target = $region17
  $region16: #{gcn_forward.1} parent=0 // pred_region
    _
  $region17: #{gcn_forward.1} parent=0 // pred_fallthru
    _
  // Predicated region
  $region18: #{gcn_forward.1} parent=0 // pred_check
    _
  $region19: #{gcn_forward.1} parent=0 // pred_check_branch
    %19 = sbr.rel (0) target = $region21
  $region20: #{gcn_forward.1} parent=0 // pred_region
    _
  $region21: #{gcn_forward.1} parent=0 // pred_fallthru
    _
  %v21 = vlaneseq
  %v22 = vand.u32 %v21, 127
  %vm23 = vcmp.lt.s32.totalorder %v22, 32
  %v24 = vsel %vm23, 1, 0
  %v25 = vcvt.s32.f32 %v24
  %v26 = vld [vmem:[%s2] sm:$0xff]
  %v27 = vld [vmem:[%s2 + $0x8] sm:$0xff]
  %v28 = vld [vmem:[%s2 + $0x10] sm:$0xff]
  %v29 = vld [vmem:[%s2 + $0x18] sm:$0xff]
  %v30 = vld [vmem:[%s0] sm:$0xf]
  %v31 = vld [vmem:[%s0 + $0x4] sm:$0xf]
  %v32 = vld [vmem:[%s0 + $0x8] sm:$0xf]
  %v33 = vld [vmem:[%s0 + $0xc] sm:$0xf]
  %v34 = vunpack.c.l.bf16 %v30
  %v35 = vunpack.c.l.bf16 %v31
  %v36 = vunpack.c.l.bf16 %v32
  %v37 = vunpack.c.l.bf16 %v33
  %v38 = vmul.f32 %v34, %v25
  %v39 = vmul.f32 %v35, %v25
  %v40 = vmul.f32 %v36, %v25
  %v41 = vmul.f32 %v37, %v25
  %42 = vadd.xlane.f32.xlu0 %v38
  %v43 = vpop.xlane.xlu0 %42
  %44 = vadd.xlane.f32.xlu0 %v39
  %v45 = vpop.xlane.xlu0 %44
  %46 = vadd.xlane.f32.xlu0 %v40
  %v47 = vpop.xlane.xlu0 %46
  %48 = vadd.xlane.f32.xlu0 %v41
  %v49 = vpop.xlane.xlu0 %48
  %v50 = vmul.f32 %v38, %v38
  %v51 = vmul.f32 %v39, %v39
  %v52 = vmul.f32 %v40, %v40
  %v53 = vmul.f32 %v41, %v41
  %54 = vadd.xlane.f32.xlu0 %v50
  %v55 = vpop.xlane.xlu0 %54
  %56 = vadd.xlane.f32.xlu0 %v51
  %v57 = vpop.xlane.xlu0 %56
  %58 = vadd.xlane.f32.xlu0 %v52
  %v59 = vpop.xlane.xlu0 %58
  %60 = vadd.xlane.f32.xlu0 %v53
  %v61 = vpop.xlane.xlu0 %60
  %v62 = vmul.f32 %v43, 0.03125
  %v63 = vmul.f32 %v45, 0.03125
  %v64 = vmul.f32 %v47, 0.03125
  %v65 = vmul.f32 %v49, 0.03125
  %v66 = vmul.f32 %v26, %v62
  %v67 = vmul.f32 %v27, %v63
  %v68 = vmul.f32 %v28, %v64
  %v69 = vmul.f32 %v29, %v65
  %v70 = vmul.f32 %v55, 0.03125
  %v71 = vmul.f32 %v57, 0.03125
  %v72 = vmul.f32 %v59, 0.03125
  %v73 = vmul.f32 %v61, 0.03125
  %v74 = vmul.f32 %v66, 2.0
  %v75 = vmul.f32 %v67, 2.0
  %v76 = vmul.f32 %v68, 2.0
  %v77 = vmul.f32 %v69, 2.0
  %v78 = vmul.f32 %v74, %v62
  %v79 = vmul.f32 %v75, %v63
  %v80 = vmul.f32 %v76, %v64
  %v81 = vmul.f32 %v77, %v65
  %v82 = vsub.f32 %v70, %v78
  %v83 = vsub.f32 %v71, %v79
  %v84 = vsub.f32 %v72, %v80
  %v85 = vsub.f32 %v73, %v81
  %v86 = vmul.f32 %v66, %v66
  %v87 = vmul.f32 %v67, %v67
  %v88 = vmul.f32 %v68, %v68
  %v89 = vmul.f32 %v69, %v69
  %v90 = vadd.f32 %v82, %v86
  %v91 = vadd.f32 %v83, %v87
  %v92 = vadd.f32 %v84, %v88
  %v93 = vadd.f32 %v85, %v89
  %v94 = vmax.f32 %v90, 0.0
  %v95 = vmax.f32 %v91, 0.0
  %v96 = vmax.f32 %v92, 0.0
  %v97 = vmax.f32 %v93, 0.0
  %99 = vset.pattern.permute.xlu0 2
  %100 = vperm.xlu0 %99, %v66
  %v101 = vpop.permute.xlu0 %100
  %104 = vset.pattern.permute.xlu0 2
  %105 = vperm.xlu0 %104, %v67
  %v106 = vpop.permute.xlu0 %105
  %109 = vset.pattern.permute.xlu0 2
  %110 = vperm.xlu0 %109, %v68
  %v111 = vpop.permute.xlu0 %110
  %114 = vset.pattern.permute.xlu0 2
  %115 = vperm.xlu0 %114, %v69
  %v116 = vpop.permute.xlu0 %115
  %v118 = vsub.f32 %v34, %v101
  %v119 = vsub.f32 %v35, %v106
  %v120 = vsub.f32 %v36, %v111
  %v121 = vsub.f32 %v37, %v116
  %123 = vset.pattern.permute.xlu0 0
  %124 = vperm.xlu0 %123, %v26
  %v125 = vpop.permute.xlu0 %124
  %128 = vset.pattern.permute.xlu0 0
  %129 = vperm.xlu0 %128, %v27
  %v130 = vpop.permute.xlu0 %129
  %133 = vset.pattern.permute.xlu0 0
  %134 = vperm.xlu0 %133, %v28
  %v135 = vpop.permute.xlu0 %134
  %138 = vset.pattern.permute.xlu0 0
  %139 = vperm.xlu0 %138, %v29
  %v140 = vpop.permute.xlu0 %139
  %v142 = vmul.f32 %v125, %v118
  %v143 = vmul.f32 %v130, %v119
  %v144 = vmul.f32 %v135, %v120
  %v145 = vmul.f32 %v140, %v121
  %v146 = vadd.f32 %v94, 1e-05
  %v147 = vadd.f32 %v95, 1e-05
  %v148 = vadd.f32 %v96, 1e-05
  %v149 = vadd.f32 %v97, 1e-05
  %v150 = vrsqrt.pop %v146
  %v151 = vrsqrt.pop %v147
  %v152 = vrsqrt.pop %v148
  %v153 = vrsqrt.pop %v149
  %155 = vset.pattern.permute.xlu0 2
  %156 = vperm.xlu0 %155, %v150
  %v157 = vpop.permute.xlu0 %156
  %160 = vset.pattern.permute.xlu0 2
  %161 = vperm.xlu0 %160, %v151
  %v162 = vpop.permute.xlu0 %161
  %165 = vset.pattern.permute.xlu0 2
  %166 = vperm.xlu0 %165, %v152
  %v167 = vpop.permute.xlu0 %166
  %170 = vset.pattern.permute.xlu0 2
  %171 = vperm.xlu0 %170, %v153
  %v172 = vpop.permute.xlu0 %171
  %v174 = vmul.f32 %v142, %v157
  %v175 = vmul.f32 %v143, %v162
  %v176 = vmul.f32 %v144, %v167
  %v177 = vmul.f32 %v145, %v172
  %178 = vset.pattern.permute.xlu0 1
  %179 = vperm.xlu0 %178, %v26
  %v180 = vpop.permute.xlu0 %179
  %182 = vset.pattern.permute.xlu0 1
  %183 = vperm.xlu0 %182, %v27
  %v184 = vpop.permute.xlu0 %183
  %186 = vset.pattern.permute.xlu0 1
  %187 = vperm.xlu0 %186, %v28
  %v188 = vpop.permute.xlu0 %187
  %190 = vset.pattern.permute.xlu0 1
  %191 = vperm.xlu0 %190, %v29
  %v192 = vpop.permute.xlu0 %191
  %v194 = vadd.f32 %v174, %v180
  %v195 = vadd.f32 %v175, %v184
  %v196 = vadd.f32 %v176, %v188
  %v197 = vadd.f32 %v177, %v192
  %v198 = vld [vmem:[%s3] sm:$0xf]
  %v199 = vld [vmem:[%s3 + $0x4] sm:$0xf]
  %v200 = vld [vmem:[%s3 + $0x8] sm:$0xf]
  %v201 = vld [vmem:[%s3 + $0xc] sm:$0xf]
  %v202 = vpack.c.bf16 %v195, %v194
  %v203 = vpack.c.bf16 %v197, %v196
  %v208 = vunpack.c.l.b16 %v198
  %v209 = vunpack.c.l.b16 %v199
  %v210 = vunpack.c.l.b16 %v200
  %v211 = vunpack.c.l.b16 %v201
  %v212 = vpack.c.b16 %v209, %v208
  %v213 = vpack.c.b16 %v211, %v210
  %vm214 = vcmask 261120
  %v216 = vsel %vm214, %v212, 0
  %v219 = vsel %vm214, %v213, 0
  %221 = vmatprep.subr.bf16.mxu0 0
  %222 = vmatpush1.bf16.msra.mxu0 %v202
  %223 = vmatprep.subr.bf16.mxu0 0
  %224 = vmatpush1.bf16.msra.mxu0 %v203
  %225 = vmatprep.subr.bf16.mxu0 0
  %226 = vmatpush1.bf16.msra.mxu0 0
  %227 = vmatprep.subr.bf16.mxu0 0
  %228 = vmatpush1.bf16.msra.mxu0 0
  %229 = vmatprep.subr.bf16.mxu0 0
  %230 = vmatpush1.bf16.msra.mxu0 0
  %231 = vmatprep.subr.bf16.mxu0 0
  %232 = vmatpush1.bf16.msra.mxu0 0
  %233 = vmatprep.subr.bf16.mxu0 0
  %234 = vmatpush1.bf16.msra.mxu0 0
  %235 = vmatprep.subr.bf16.mxu0 0
  %236 = vmatpush1.bf16.msra.mxu0 0
  %237 = vmatprep.subr.bf16.mxu0 0
  %238 = vmatpush1.bf16.msra.mxu0 0
  %239 = vmatprep.subr.bf16.mxu0 0
  %240 = vmatpush1.bf16.msra.mxu0 0
  %241 = vmatprep.subr.bf16.mxu0 0
  %242 = vmatpush1.bf16.msra.mxu0 0
  %243 = vmatprep.subr.bf16.mxu0 0
  %244 = vmatpush1.bf16.msra.mxu0 0
  %245 = vmatprep.subr.bf16.mxu0 0
  %246 = vmatpush1.bf16.msra.mxu0 0
  %247 = vmatprep.subr.bf16.mxu0 0
  %248 = vmatpush1.bf16.msra.mxu0 0
  %249 = vmatprep.subr.bf16.mxu0 0
  %250 = vmatpush1.bf16.msra.mxu0 0
  %251 = vmatprep.subr.bf16.mxu0 0
  %252 = vmatpush1.bf16.msra.mxu0 0
  %253 = vmatprep.mubr.bf16.mxu0 0
  %254 = vmatmul.mubr.bf16.gmra.mrb[0].mxu0 %v216
  %v255 = vpop.f32.mrb[0].mxu0
  %v256 = vadd.f32 0.0, %v255
  %v257 = vpop.f32.mrb[0].mxu0
  %v258 = vpop.f32.mrb[0].mxu0
  %v259 = vadd.f32 0.0, %v258
  %v260 = vpop.f32.mrb[0].mxu0
  %261 = vmatprep.mubr.bf16.mxu0 0
  %262 = vmatmul.mubr.bf16.gmra.mrb[0].mxu0 %v219
  %v263 = vpop.f32.mrb[0].mxu0
  %v264 = vadd.f32 0.0, %v263
  %v265 = vpop.f32.mrb[0].mxu0
  %v266 = vpop.f32.mrb[0].mxu0
  %v267 = vadd.f32 0.0, %v266
  %v268 = vpop.f32.mrb[0].mxu0
  %269 = vdwg.mxu0
  %v270 = vpack.c.bf16 %v259, %v256
  %v271 = vpack.c.bf16 %v267, %v264
  %v272 = vld [vmem:[%s4] sm:$0xf]
  %v273 = vld [vmem:[%s4 + $0x4] sm:$0xf]
  %v274 = vld [vmem:[%s4 + $0x8] sm:$0xf]
  %v275 = vld [vmem:[%s4 + $0xc] sm:$0xf]
  %v276 = vld [vmem:[%s4 + $0x10] sm:$0xf]
  %v277 = vld [vmem:[%s4 + $0x14] sm:$0xf]
  %v278 = vld [vmem:[%s4 + $0x18] sm:$0xf]
  %v279 = vld [vmem:[%s4 + $0x1c] sm:$0xf]
  %v280 = vld [vmem:[%s4 + $0x20] sm:$0xf]
  %v281 = vld [vmem:[%s4 + $0x24] sm:$0xf]
  %v282 = vld [vmem:[%s4 + $0x28] sm:$0xf]
  %v283 = vld [vmem:[%s4 + $0x2c] sm:$0xf]
  %v284 = vld [vmem:[%s4 + $0x30] sm:$0xf]
  %v285 = vld [vmem:[%s4 + $0x34] sm:$0xf]
  %v286 = vld [vmem:[%s4 + $0x38] sm:$0xf]
  %v287 = vld [vmem:[%s4 + $0x3c] sm:$0xf]
  %288 = vset.pattern.permute.xlu0 9
  %289 = vperm.xlu0 %288, %v26
  %v290 = vpop.permute.xlu0 %289
  %292 = vset.pattern.permute.xlu0 9
  %293 = vperm.xlu0 %292, %v27
  %v294 = vpop.permute.xlu0 %293
  %296 = vset.pattern.permute.xlu0 9
  %297 = vperm.xlu0 %296, %v28
  %v298 = vpop.permute.xlu0 %297
  %300 = vset.pattern.permute.xlu0 9
  %301 = vperm.xlu0 %300, %v29
  %v302 = vpop.permute.xlu0 %301
  %v320 = vunpack.c.l.b16 %v272
  %v321 = vunpack.c.l.b16 %v273
  %v322 = vunpack.c.l.b16 %v274
  %v323 = vunpack.c.l.b16 %v275
  %v324 = vunpack.c.l.b16 %v276
  %v325 = vunpack.c.l.b16 %v277
  %v326 = vunpack.c.l.b16 %v278
  %v327 = vunpack.c.l.b16 %v279
  %v328 = vunpack.c.l.b16 %v280
  %v329 = vunpack.c.l.b16 %v281
  %v330 = vunpack.c.l.b16 %v282
  %v331 = vunpack.c.l.b16 %v283
  %v332 = vunpack.c.l.b16 %v284
  %v333 = vunpack.c.l.b16 %v285
  %v334 = vunpack.c.l.b16 %v286
  %v335 = vunpack.c.l.b16 %v287
  %v336 = vpack.c.b16 %v321, %v320
  %v337 = vpack.c.b16 %v323, %v322
  %v338 = vpack.c.b16 %v325, %v324
  %v339 = vpack.c.b16 %v327, %v326
  %v340 = vpack.c.b16 %v329, %v328
  %v341 = vpack.c.b16 %v331, %v330
  %v342 = vpack.c.b16 %v333, %v332
  %v343 = vpack.c.b16 %v335, %v334
  %352 = vmatprep.subr.bf16.mxu0 0
  %353 = vmatpush1.bf16.msra.mxu0 %v336
  %354 = vmatprep.subr.bf16.mxu0 0
  %355 = vmatpush1.bf16.msra.mxu0 %v337
  %356 = vmatprep.subr.bf16.mxu0 0
  %357 = vmatpush1.bf16.msra.mxu0 %v338
  %358 = vmatprep.subr.bf16.mxu0 0
  %359 = vmatpush1.bf16.msra.mxu0 %v339
  %360 = vmatprep.subr.bf16.mxu0 0
  %361 = vmatpush1.bf16.msra.mxu0 %v340
  %362 = vmatprep.subr.bf16.mxu0 0
  %363 = vmatpush1.bf16.msra.mxu0 %v341
  %364 = vmatprep.subr.bf16.mxu0 0
  %365 = vmatpush1.bf16.msra.mxu0 %v342
  %366 = vmatprep.subr.bf16.mxu0 0
  %367 = vmatpush1.bf16.msra.mxu0 %v343
  %368 = vmatprep.subr.bf16.mxu0 0
  %369 = vmatpush1.bf16.msra.mxu0 0
  %370 = vmatprep.subr.bf16.mxu0 0
  %371 = vmatpush1.bf16.msra.mxu0 0
  %372 = vmatprep.subr.bf16.mxu0 0
  %373 = vmatpush1.bf16.msra.mxu0 0
  %374 = vmatprep.subr.bf16.mxu0 0
  %375 = vmatpush1.bf16.msra.mxu0 0
  %376 = vmatprep.subr.bf16.mxu0 0
  %377 = vmatpush1.bf16.msra.mxu0 0
  %378 = vmatprep.subr.bf16.mxu0 0
  %379 = vmatpush1.bf16.msra.mxu0 0
  %380 = vmatprep.subr.bf16.mxu0 0
  %381 = vmatpush1.bf16.msra.mxu0 0
  %382 = vmatprep.subr.bf16.mxu0 0
  %383 = vmatpush1.bf16.msra.mxu0 0
  %384 = vmatprep.mubr.bf16.mxu0 0
  %385 = vmatmul.mubr.bf16.gmra.mrb[0].mxu0 %v270
  %v386 = vpop.f32.mrb[0].mxu0
  %v387 = vadd.f32 %v290, %v386
  %v388 = vpop.f32.mrb[0].mxu0
  %v389 = vpop.f32.mrb[0].mxu0
  %v390 = vadd.f32 %v294, %v389
  %v391 = vpop.f32.mrb[0].mxu0
  %392 = vmatprep.mubr.bf16.mxu0 0
  %393 = vmatmul.mubr.bf16.gmra.mrb[0].mxu0 %v271
  %v394 = vpop.f32.mrb[0].mxu0
  %v395 = vadd.f32 %v298, %v394
  %v396 = vpop.f32.mrb[0].mxu0
  %v397 = vpop.f32.mrb[0].mxu0
  %v398 = vadd.f32 %v302, %v397
  %v399 = vpop.f32.mrb[0].mxu0
  %400 = vdwg.mxu0
  %v401 = vmax.f32 %v387, 0.0
  %v402 = vmax.f32 %v390, 0.0
  %v403 = vmax.f32 %v395, 0.0
  %v404 = vmax.f32 %v398, 0.0
  %v405 = vmul.f32 %v401, %v25
  %v406 = vmul.f32 %v402, %v25
  %v407 = vmul.f32 %v403, %v25
  %v408 = vmul.f32 %v404, %v25
  %409 = vadd.xlane.f32.xlu0 %v405
  %v410 = vpop.xlane.xlu0 %409
  %411 = vadd.xlane.f32.xlu0 %v406
  %v412 = vpop.xlane.xlu0 %411
  %413 = vadd.xlane.f32.xlu0 %v407
  %v414 = vpop.xlane.xlu0 %413
  %415 = vadd.xlane.f32.xlu0 %v408
  %v416 = vpop.xlane.xlu0 %415
  %v417 = vmul.f32 %v405, %v405
  %v418 = vmul.f32 %v406, %v406
  %v419 = vmul.f32 %v407, %v407
  %v420 = vmul.f32 %v408, %v408
  %421 = vadd.xlane.f32.xlu0 %v417
  %v422 = vpop.xlane.xlu0 %421
  %423 = vadd.xlane.f32.xlu0 %v418
  %v424 = vpop.xlane.xlu0 %423
  %425 = vadd.xlane.f32.xlu0 %v419
  %v426 = vpop.xlane.xlu0 %425
  %427 = vadd.xlane.f32.xlu0 %v420
  %v428 = vpop.xlane.xlu0 %427
  %v429 = vmul.f32 %v410, 0.03125
  %v430 = vmul.f32 %v412, 0.03125
  %v431 = vmul.f32 %v414, 0.03125
  %v432 = vmul.f32 %v416, 0.03125
  %v433 = vmul.f32 %v26, %v429
  %v434 = vmul.f32 %v27, %v430
  %v435 = vmul.f32 %v28, %v431
  %v436 = vmul.f32 %v29, %v432
  %v437 = vmul.f32 %v422, 0.03125
  %v438 = vmul.f32 %v424, 0.03125
  %v439 = vmul.f32 %v426, 0.03125
  %v440 = vmul.f32 %v428, 0.03125
  %v441 = vmul.f32 %v433, 2.0
  %v442 = vmul.f32 %v434, 2.0
  %v443 = vmul.f32 %v435, 2.0
  %v444 = vmul.f32 %v436, 2.0
  %v445 = vmul.f32 %v441, %v429
  %v446 = vmul.f32 %v442, %v430
  %v447 = vmul.f32 %v443, %v431
  %v448 = vmul.f32 %v444, %v432
  %v449 = vsub.f32 %v437, %v445
  %v450 = vsub.f32 %v438, %v446
  %v451 = vsub.f32 %v439, %v447
  %v452 = vsub.f32 %v440, %v448
  %v453 = vmul.f32 %v433, %v433
  %v454 = vmul.f32 %v434, %v434
  %v455 = vmul.f32 %v435, %v435
  %v456 = vmul.f32 %v436, %v436
  %v457 = vadd.f32 %v449, %v453
  %v458 = vadd.f32 %v450, %v454
  %v459 = vadd.f32 %v451, %v455
  %v460 = vadd.f32 %v452, %v456
  %v461 = vmax.f32 %v457, 0.0
  %v462 = vmax.f32 %v458, 0.0
  %v463 = vmax.f32 %v459, 0.0
  %v464 = vmax.f32 %v460, 0.0
  %466 = vset.pattern.permute.xlu0 5
  %467 = vperm.xlu0 %466, %v433
  %v468 = vpop.permute.xlu0 %467
  %471 = vset.pattern.permute.xlu0 5
  %472 = vperm.xlu0 %471, %v434
  %v473 = vpop.permute.xlu0 %472
  %476 = vset.pattern.permute.xlu0 5
  %477 = vperm.xlu0 %476, %v435
  %v478 = vpop.permute.xlu0 %477
  %481 = vset.pattern.permute.xlu0 5
  %482 = vperm.xlu0 %481, %v436
  %v483 = vpop.permute.xlu0 %482
  %v485 = vsub.f32 %v401, %v468
  %v486 = vsub.f32 %v402, %v473
  %v487 = vsub.f32 %v403, %v478
  %v488 = vsub.f32 %v404, %v483
  %489 = vset.pattern.permute.xlu0 3
  %490 = vperm.xlu0 %489, %v26
  %v491 = vpop.permute.xlu0 %490
  %493 = vset.pattern.permute.xlu0 3
  %494 = vperm.xlu0 %493, %v27
  %v495 = vpop.permute.xlu0 %494
  %497 = vset.pattern.permute.xlu0 3
  %498 = vperm.xlu0 %497, %v28
  %v499 = vpop.permute.xlu0 %498
  %501 = vset.pattern.permute.xlu0 3
  %502 = vperm.xlu0 %501, %v29
  %v503 = vpop.permute.xlu0 %502
  %v505 = vmul.f32 %v491, %v485
  %v506 = vmul.f32 %v495, %v486
  %v507 = vmul.f32 %v499, %v487
  %v508 = vmul.f32 %v503, %v488
  %v509 = vadd.f32 %v461, 1e-05
  %v510 = vadd.f32 %v462, 1e-05
  %v511 = vadd.f32 %v463, 1e-05
  %v512 = vadd.f32 %v464, 1e-05
  %v513 = vrsqrt.pop %v509
  %v514 = vrsqrt.pop %v510
  %v515 = vrsqrt.pop %v511
  %v516 = vrsqrt.pop %v512
  %518 = vset.pattern.permute.xlu0 5
  %519 = vperm.xlu0 %518, %v513
  %v520 = vpop.permute.xlu0 %519
  %523 = vset.pattern.permute.xlu0 5
  %524 = vperm.xlu0 %523, %v514
  %v525 = vpop.permute.xlu0 %524
  %528 = vset.pattern.permute.xlu0 5
  %529 = vperm.xlu0 %528, %v515
  %v530 = vpop.permute.xlu0 %529
  %533 = vset.pattern.permute.xlu0 5
  %534 = vperm.xlu0 %533, %v516
  %v535 = vpop.permute.xlu0 %534
  %v537 = vmul.f32 %v505, %v520
  %v538 = vmul.f32 %v506, %v525
  %v539 = vmul.f32 %v507, %v530
  %v540 = vmul.f32 %v508, %v535
  %541 = vset.pattern.permute.xlu0 4
  %542 = vperm.xlu0 %541, %v26
  %v543 = vpop.permute.xlu0 %542
  %545 = vset.pattern.permute.xlu0 4
  %546 = vperm.xlu0 %545, %v27
  %v547 = vpop.permute.xlu0 %546
  %549 = vset.pattern.permute.xlu0 4
  %550 = vperm.xlu0 %549, %v28
  %v551 = vpop.permute.xlu0 %550
  %553 = vset.pattern.permute.xlu0 4
  %554 = vperm.xlu0 %553, %v29
  %v555 = vpop.permute.xlu0 %554
  %v557 = vadd.f32 %v537, %v543
  %v558 = vadd.f32 %v538, %v547
  %v559 = vadd.f32 %v539, %v551
  %v560 = vadd.f32 %v540, %v555
  %s561 = scalar_lea.vmem %s3, 16
  %v562 = vld [vmem:[%s561] sm:$0xf]
  %v563 = vld [vmem:[%s561 + $0x4] sm:$0xf]
  %v564 = vld [vmem:[%s561 + $0x8] sm:$0xf]
  %v565 = vld [vmem:[%s561 + $0xc] sm:$0xf]
  %v566 = vpack.c.bf16 %v558, %v557
  %v567 = vpack.c.bf16 %v560, %v559
  %v572 = vunpack.c.l.b16 %v562
  %v573 = vunpack.c.l.b16 %v563
  %v574 = vunpack.c.l.b16 %v564
  %v575 = vunpack.c.l.b16 %v565
  %v576 = vpack.c.b16 %v573, %v572
  %v577 = vpack.c.b16 %v575, %v574
  %v579 = vsel %vm214, %v576, 0
  %v582 = vsel %vm214, %v577, 0
  %584 = vmatprep.subr.bf16.mxu0 0
  %585 = vmatpush1.bf16.msra.mxu0 %v566
  %586 = vmatprep.subr.bf16.mxu0 0
  %587 = vmatpush1.bf16.msra.mxu0 %v567
  %588 = vmatprep.subr.bf16.mxu0 0
  %589 = vmatpush1.bf16.msra.mxu0 0
  %590 = vmatprep.subr.bf16.mxu0 0
  %591 = vmatpush1.bf16.msra.mxu0 0
  %592 = vmatprep.subr.bf16.mxu0 0
  %593 = vmatpush1.bf16.msra.mxu0 0
  %594 = vmatprep.subr.bf16.mxu0 0
  %595 = vmatpush1.bf16.msra.mxu0 0
  %596 = vmatprep.subr.bf16.mxu0 0
  %597 = vmatpush1.bf16.msra.mxu0 0
  %598 = vmatprep.subr.bf16.mxu0 0
  %599 = vmatpush1.bf16.msra.mxu0 0
  %600 = vmatprep.subr.bf16.mxu0 0
  %601 = vmatpush1.bf16.msra.mxu0 0
  %602 = vmatprep.subr.bf16.mxu0 0
  %603 = vmatpush1.bf16.msra.mxu0 0
  %604 = vmatprep.subr.bf16.mxu0 0
  %605 = vmatpush1.bf16.msra.mxu0 0
  %606 = vmatprep.subr.bf16.mxu0 0
  %607 = vmatpush1.bf16.msra.mxu0 0
  %608 = vmatprep.subr.bf16.mxu0 0
  %609 = vmatpush1.bf16.msra.mxu0 0
  %610 = vmatprep.subr.bf16.mxu0 0
  %611 = vmatpush1.bf16.msra.mxu0 0
  %612 = vmatprep.subr.bf16.mxu0 0
  %613 = vmatpush1.bf16.msra.mxu0 0
  %614 = vmatprep.subr.bf16.mxu0 0
  %615 = vmatpush1.bf16.msra.mxu0 0
  %616 = vmatprep.mubr.bf16.mxu0 0
  %617 = vmatmul.mubr.bf16.gmra.mrb[0].mxu0 %v579
  %v618 = vpop.f32.mrb[0].mxu0
  %v619 = vadd.f32 0.0, %v618
  %v620 = vpop.f32.mrb[0].mxu0
  %v621 = vpop.f32.mrb[0].mxu0
  %v622 = vadd.f32 0.0, %v621
  %v623 = vpop.f32.mrb[0].mxu0
  %624 = vmatprep.mubr.bf16.mxu0 0
  %625 = vmatmul.mubr.bf16.gmra.mrb[0].mxu0 %v582
  %v626 = vpop.f32.mrb[0].mxu0
  %v627 = vadd.f32 0.0, %v626
  %v628 = vpop.f32.mrb[0].mxu0
  %v629 = vpop.f32.mrb[0].mxu0
  %v630 = vadd.f32 0.0, %v629
  %v631 = vpop.f32.mrb[0].mxu0
  %632 = vdwg.mxu0
  %v633 = vpack.c.bf16 %v622, %v619
  %v634 = vpack.c.bf16 %v630, %v627
  %635 = vset.pattern.permute.xlu0 10
  %636 = vperm.xlu0 %635, %v26
  %v637 = vpop.permute.xlu0 %636
  %639 = vset.pattern.permute.xlu0 10
  %640 = vperm.xlu0 %639, %v27
  %v641 = vpop.permute.xlu0 %640
  %643 = vset.pattern.permute.xlu0 10
  %644 = vperm.xlu0 %643, %v28
  %v645 = vpop.permute.xlu0 %644
  %647 = vset.pattern.permute.xlu0 10
  %648 = vperm.xlu0 %647, %v29
  %v649 = vpop.permute.xlu0 %648
  %651 = vmatprep.subr.bf16.mxu0 0
  %652 = vmatpush1.bf16.msra.mxu0 %v336
  %653 = vmatprep.subr.bf16.mxu0 0
  %654 = vmatpush1.bf16.msra.mxu0 %v337
  %655 = vmatprep.subr.bf16.mxu0 0
  %656 = vmatpush1.bf16.msra.mxu0 %v338
  %657 = vmatprep.subr.bf16.mxu0 0
  %658 = vmatpush1.bf16.msra.mxu0 %v339
  %659 = vmatprep.subr.bf16.mxu0 0
  %660 = vmatpush1.bf16.msra.mxu0 %v340
  %661 = vmatprep.subr.bf16.mxu0 0
  %662 = vmatpush1.bf16.msra.mxu0 %v341
  %663 = vmatprep.subr.bf16.mxu0 0
  %664 = vmatpush1.bf16.msra.mxu0 %v342
  %665 = vmatprep.subr.bf16.mxu0 0
  %666 = vmatpush1.bf16.msra.mxu0 %v343
  %667 = vmatprep.subr.bf16.mxu0 0
  %668 = vmatpush1.bf16.msra.mxu0 0
  %669 = vmatprep.subr.bf16.mxu0 0
  %670 = vmatpush1.bf16.msra.mxu0 0
  %671 = vmatprep.subr.bf16.mxu0 0
  %672 = vmatpush1.bf16.msra.mxu0 0
  %673 = vmatprep.subr.bf16.mxu0 0
  %674 = vmatpush1.bf16.msra.mxu0 0
  %675 = vmatprep.subr.bf16.mxu0 0
  %676 = vmatpush1.bf16.msra.mxu0 0
  %677 = vmatprep.subr.bf16.mxu0 0
  %678 = vmatpush1.bf16.msra.mxu0 0
  %679 = vmatprep.subr.bf16.mxu0 0
  %680 = vmatpush1.bf16.msra.mxu0 0
  %681 = vmatprep.subr.bf16.mxu0 0
  %682 = vmatpush1.bf16.msra.mxu0 0
  %683 = vmatprep.mubr.bf16.mxu0 0
  %684 = vmatmul.mubr.bf16.gmra.mrb[0].mxu0 %v633
  %v685 = vpop.f32.mrb[0].mxu0
  %v686 = vadd.f32 %v637, %v685
  %v687 = vpop.f32.mrb[0].mxu0
  %v688 = vpop.f32.mrb[0].mxu0
  %v689 = vadd.f32 %v641, %v688
  %v690 = vpop.f32.mrb[0].mxu0
  %691 = vmatprep.mubr.bf16.mxu0 0
  %692 = vmatmul.mubr.bf16.gmra.mrb[0].mxu0 %v634
  %v693 = vpop.f32.mrb[0].mxu0
  %v694 = vadd.f32 %v645, %v693
  %v695 = vpop.f32.mrb[0].mxu0
  %v696 = vpop.f32.mrb[0].mxu0
  %v697 = vadd.f32 %v649, %v696
  %v698 = vpop.f32.mrb[0].mxu0
  %699 = vdwg.mxu0
  %v700 = vmax.f32 %v686, 0.0
  %v701 = vmax.f32 %v689, 0.0
  %v702 = vmax.f32 %v694, 0.0
  %v703 = vmax.f32 %v697, 0.0
  %v704 = vmul.f32 %v700, %v25
  %v705 = vmul.f32 %v701, %v25
  %v706 = vmul.f32 %v702, %v25
  %v707 = vmul.f32 %v703, %v25
  %708 = vadd.xlane.f32.xlu0 %v704
  %v709 = vpop.xlane.xlu0 %708
  %710 = vadd.xlane.f32.xlu0 %v705
  %v711 = vpop.xlane.xlu0 %710
  %712 = vadd.xlane.f32.xlu0 %v706
  %v713 = vpop.xlane.xlu0 %712
  %714 = vadd.xlane.f32.xlu0 %v707
  %v715 = vpop.xlane.xlu0 %714
  %v716 = vmul.f32 %v704, %v704
  %v717 = vmul.f32 %v705, %v705
  %v718 = vmul.f32 %v706, %v706
  %v719 = vmul.f32 %v707, %v707
  %720 = vadd.xlane.f32.xlu0 %v716
  %v721 = vpop.xlane.xlu0 %720
  %722 = vadd.xlane.f32.xlu0 %v717
  %v723 = vpop.xlane.xlu0 %722
  %724 = vadd.xlane.f32.xlu0 %v718
  %v725 = vpop.xlane.xlu0 %724
  %726 = vadd.xlane.f32.xlu0 %v719
  %v727 = vpop.xlane.xlu0 %726
  %v728 = vmul.f32 %v709, 0.03125
  %v729 = vmul.f32 %v711, 0.03125
  %v730 = vmul.f32 %v713, 0.03125
  %v731 = vmul.f32 %v715, 0.03125
  %v732 = vmul.f32 %v26, %v728
  %v733 = vmul.f32 %v27, %v729
  %v734 = vmul.f32 %v28, %v730
  %v735 = vmul.f32 %v29, %v731
  %v736 = vmul.f32 %v721, 0.03125
  %v737 = vmul.f32 %v723, 0.03125
  %v738 = vmul.f32 %v725, 0.03125
  %v739 = vmul.f32 %v727, 0.03125
  %v740 = vmul.f32 %v732, 2.0
  %v741 = vmul.f32 %v733, 2.0
  %v742 = vmul.f32 %v734, 2.0
  %v743 = vmul.f32 %v735, 2.0
  %v744 = vmul.f32 %v740, %v728
  %v745 = vmul.f32 %v741, %v729
  %v746 = vmul.f32 %v742, %v730
  %v747 = vmul.f32 %v743, %v731
  %v748 = vsub.f32 %v736, %v744
  %v749 = vsub.f32 %v737, %v745
  %v750 = vsub.f32 %v738, %v746
  %v751 = vsub.f32 %v739, %v747
  %v752 = vmul.f32 %v732, %v732
  %v753 = vmul.f32 %v733, %v733
  %v754 = vmul.f32 %v734, %v734
  %v755 = vmul.f32 %v735, %v735
  %v756 = vadd.f32 %v748, %v752
  %v757 = vadd.f32 %v749, %v753
  %v758 = vadd.f32 %v750, %v754
  %v759 = vadd.f32 %v751, %v755
  %v760 = vmax.f32 %v756, 0.0
  %v761 = vmax.f32 %v757, 0.0
  %v762 = vmax.f32 %v758, 0.0
  %v763 = vmax.f32 %v759, 0.0
  %765 = vset.pattern.permute.xlu0 8
  %766 = vperm.xlu0 %765, %v732
  %v767 = vpop.permute.xlu0 %766
  %770 = vset.pattern.permute.xlu0 8
  %771 = vperm.xlu0 %770, %v733
  %v772 = vpop.permute.xlu0 %771
  %775 = vset.pattern.permute.xlu0 8
  %776 = vperm.xlu0 %775, %v734
  %v777 = vpop.permute.xlu0 %776
  %780 = vset.pattern.permute.xlu0 8
  %781 = vperm.xlu0 %780, %v735
  %v782 = vpop.permute.xlu0 %781
  %v784 = vsub.f32 %v700, %v767
  %v785 = vsub.f32 %v701, %v772
  %v786 = vsub.f32 %v702, %v777
  %v787 = vsub.f32 %v703, %v782
  %788 = vset.pattern.permute.xlu0 6
  %789 = vperm.xlu0 %788, %v26
  %v790 = vpop.permute.xlu0 %789
  %792 = vset.pattern.permute.xlu0 6
  %793 = vperm.xlu0 %792, %v27
  %v794 = vpop.permute.xlu0 %793
  %796 = vset.pattern.permute.xlu0 6
  %797 = vperm.xlu0 %796, %v28
  %v798 = vpop.permute.xlu0 %797
  %800 = vset.pattern.permute.xlu0 6
  %801 = vperm.xlu0 %800, %v29
  %v802 = vpop.permute.xlu0 %801
  %v804 = vmul.f32 %v790, %v784
  %v805 = vmul.f32 %v794, %v785
  %v806 = vmul.f32 %v798, %v786
  %v807 = vmul.f32 %v802, %v787
  %v808 = vadd.f32 %v760, 1e-05
  %v809 = vadd.f32 %v761, 1e-05
  %v810 = vadd.f32 %v762, 1e-05
  %v811 = vadd.f32 %v763, 1e-05
  %v812 = vrsqrt.pop %v808
  %v813 = vrsqrt.pop %v809
  %v814 = vrsqrt.pop %v810
  %v815 = vrsqrt.pop %v811
  %817 = vset.pattern.permute.xlu0 8
  %818 = vperm.xlu0 %817, %v812
  %v819 = vpop.permute.xlu0 %818
  %822 = vset.pattern.permute.xlu0 8
  %823 = vperm.xlu0 %822, %v813
  %v824 = vpop.permute.xlu0 %823
  %827 = vset.pattern.permute.xlu0 8
  %828 = vperm.xlu0 %827, %v814
  %v829 = vpop.permute.xlu0 %828
  %832 = vset.pattern.permute.xlu0 8
  %833 = vperm.xlu0 %832, %v815
  %v834 = vpop.permute.xlu0 %833
  %v836 = vmul.f32 %v804, %v819
  %v837 = vmul.f32 %v805, %v824
  %v838 = vmul.f32 %v806, %v829
  %v839 = vmul.f32 %v807, %v834
  %840 = vset.pattern.permute.xlu0 7
  %841 = vperm.xlu0 %840, %v26
  %v842 = vpop.permute.xlu0 %841
  %844 = vset.pattern.permute.xlu0 7
  %845 = vperm.xlu0 %844, %v27
  %v846 = vpop.permute.xlu0 %845
  %848 = vset.pattern.permute.xlu0 7
  %849 = vperm.xlu0 %848, %v28
  %v850 = vpop.permute.xlu0 %849
  %852 = vset.pattern.permute.xlu0 7
  %853 = vperm.xlu0 %852, %v29
  %v854 = vpop.permute.xlu0 %853
  %v856 = vadd.f32 %v836, %v842
  %v857 = vadd.f32 %v837, %v846
  %v858 = vadd.f32 %v838, %v850
  %v859 = vadd.f32 %v839, %v854
  %s860 = scalar_lea.vmem %s3, 32
  %v861 = vld [vmem:[%s860] sm:$0xf]
  %v862 = vld [vmem:[%s860 + $0x4] sm:$0xf]
  %v863 = vld [vmem:[%s860 + $0x8] sm:$0xf]
  %v864 = vld [vmem:[%s860 + $0xc] sm:$0xf]
  %v865 = vpack.c.bf16 %v857, %v856
  %v866 = vpack.c.bf16 %v859, %v858
  %v871 = vunpack.c.l.b16 %v861
  %v872 = vunpack.c.l.b16 %v862
  %v873 = vunpack.c.l.b16 %v863
  %v874 = vunpack.c.l.b16 %v864
  %v875 = vpack.c.b16 %v872, %v871
  %v876 = vpack.c.b16 %v874, %v873
  %v878 = vsel %vm214, %v875, 0
  %v881 = vsel %vm214, %v876, 0
  %883 = vmatprep.subr.bf16.mxu0 0
  %884 = vmatpush1.bf16.msra.mxu0 %v865
  %885 = vmatprep.subr.bf16.mxu0 0
  %886 = vmatpush1.bf16.msra.mxu0 %v866
  %887 = vmatprep.subr.bf16.mxu0 0
  %888 = vmatpush1.bf16.msra.mxu0 0
  %889 = vmatprep.subr.bf16.mxu0 0
  %890 = vmatpush1.bf16.msra.mxu0 0
  %891 = vmatprep.subr.bf16.mxu0 0
  %892 = vmatpush1.bf16.msra.mxu0 0
  %893 = vmatprep.subr.bf16.mxu0 0
  %894 = vmatpush1.bf16.msra.mxu0 0
  %895 = vmatprep.subr.bf16.mxu0 0
  %896 = vmatpush1.bf16.msra.mxu0 0
  %897 = vmatprep.subr.bf16.mxu0 0
  %898 = vmatpush1.bf16.msra.mxu0 0
  %899 = vmatprep.subr.bf16.mxu0 0
  %900 = vmatpush1.bf16.msra.mxu0 0
  %901 = vmatprep.subr.bf16.mxu0 0
  %902 = vmatpush1.bf16.msra.mxu0 0
  %903 = vmatprep.subr.bf16.mxu0 0
  %904 = vmatpush1.bf16.msra.mxu0 0
  %905 = vmatprep.subr.bf16.mxu0 0
  %906 = vmatpush1.bf16.msra.mxu0 0
  %907 = vmatprep.subr.bf16.mxu0 0
  %908 = vmatpush1.bf16.msra.mxu0 0
  %909 = vmatprep.subr.bf16.mxu0 0
  %910 = vmatpush1.bf16.msra.mxu0 0
  %911 = vmatprep.subr.bf16.mxu0 0
  %912 = vmatpush1.bf16.msra.mxu0 0
  %913 = vmatprep.subr.bf16.mxu0 0
  %914 = vmatpush1.bf16.msra.mxu0 0
  %915 = vmatprep.mubr.bf16.mxu0 0
  %916 = vmatmul.mubr.bf16.gmra.mrb[0].mxu0 %v878
  %v917 = vpop.f32.mrb[0].mxu0
  %v918 = vadd.f32 0.0, %v917
  %v919 = vpop.f32.mrb[0].mxu0
  %v920 = vpop.f32.mrb[0].mxu0
  %v921 = vadd.f32 0.0, %v920
  %v922 = vpop.f32.mrb[0].mxu0
  %923 = vmatprep.mubr.bf16.mxu0 0
  %924 = vmatmul.mubr.bf16.gmra.mrb[0].mxu0 %v881
  %v925 = vpop.f32.mrb[0].mxu0
  %v926 = vadd.f32 0.0, %v925
  %v927 = vpop.f32.mrb[0].mxu0
  %v928 = vpop.f32.mrb[0].mxu0
  %v929 = vadd.f32 0.0, %v928
  %v930 = vpop.f32.mrb[0].mxu0
  %931 = vdwg.mxu0
  %v932 = vpack.c.bf16 %v921, %v918
  %v933 = vpack.c.bf16 %v929, %v926
  %934 = vset.pattern.permute.xlu0 11
  %935 = vperm.xlu0 %934, %v26
  %v936 = vpop.permute.xlu0 %935
  %938 = vset.pattern.permute.xlu0 11
  %939 = vperm.xlu0 %938, %v27
  %v940 = vpop.permute.xlu0 %939
  %942 = vset.pattern.permute.xlu0 11
  %943 = vperm.xlu0 %942, %v28
  %v944 = vpop.permute.xlu0 %943
  %946 = vset.pattern.permute.xlu0 11
  %947 = vperm.xlu0 %946, %v29
  %v948 = vpop.permute.xlu0 %947
  %950 = vmatprep.subr.bf16.mxu0 0
  %951 = vmatpush1.bf16.msra.mxu0 %v336
  %952 = vmatprep.subr.bf16.mxu0 0
  %953 = vmatpush1.bf16.msra.mxu0 %v337
  %954 = vmatprep.subr.bf16.mxu0 0
  %955 = vmatpush1.bf16.msra.mxu0 %v338
  %956 = vmatprep.subr.bf16.mxu0 0
  %957 = vmatpush1.bf16.msra.mxu0 %v339
  %958 = vmatprep.subr.bf16.mxu0 0
  %959 = vmatpush1.bf16.msra.mxu0 %v340
  %960 = vmatprep.subr.bf16.mxu0 0
  %961 = vmatpush1.bf16.msra.mxu0 %v341
  %962 = vmatprep.subr.bf16.mxu0 0
  %963 = vmatpush1.bf16.msra.mxu0 %v342
  %964 = vmatprep.subr.bf16.mxu0 0
  %965 = vmatpush1.bf16.msra.mxu0 %v343
  %966 = vmatprep.subr.bf16.mxu0 0
  %967 = vmatpush1.bf16.msra.mxu0 0
  %968 = vmatprep.subr.bf16.mxu0 0
  %969 = vmatpush1.bf16.msra.mxu0 0
  %970 = vmatprep.subr.bf16.mxu0 0
  %971 = vmatpush1.bf16.msra.mxu0 0
  %972 = vmatprep.subr.bf16.mxu0 0
  %973 = vmatpush1.bf16.msra.mxu0 0
  %974 = vmatprep.subr.bf16.mxu0 0
  %975 = vmatpush1.bf16.msra.mxu0 0
  %976 = vmatprep.subr.bf16.mxu0 0
  %977 = vmatpush1.bf16.msra.mxu0 0
  %978 = vmatprep.subr.bf16.mxu0 0
  %979 = vmatpush1.bf16.msra.mxu0 0
  %980 = vmatprep.subr.bf16.mxu0 0
  %981 = vmatpush1.bf16.msra.mxu0 0
  %982 = vmatprep.mubr.bf16.mxu0 0
  %983 = vmatmul.mubr.bf16.gmra.mrb[0].mxu0 %v932
  %v984 = vpop.f32.mrb[0].mxu0
  %v985 = vadd.f32 %v936, %v984
  %v986 = vpop.f32.mrb[0].mxu0
  %v987 = vpop.f32.mrb[0].mxu0
  %v988 = vadd.f32 %v940, %v987
  %v989 = vpop.f32.mrb[0].mxu0
  %990 = vmatprep.mubr.bf16.mxu0 0
  %991 = vmatmul.mubr.bf16.gmra.mrb[0].mxu0 %v933
  %v992 = vpop.f32.mrb[0].mxu0
  %v993 = vadd.f32 %v944, %v992
  %v994 = vpop.f32.mrb[0].mxu0
  %v995 = vpop.f32.mrb[0].mxu0
  %v996 = vadd.f32 %v948, %v995
  %v997 = vpop.f32.mrb[0].mxu0
  %998 = vdwg.mxu0
  %v999 = vmax.f32 %v985, 0.0
  %v1000 = vmax.f32 %v988, 0.0
  %v1001 = vmax.f32 %v993, 0.0
  %v1002 = vmax.f32 %v996, 0.0
  %v1003 = vld [vmem:[%s1] sm:$0xff]
  %v1004 = vld [vmem:[%s1 + $0x8] sm:$0xff]
  %v1005 = vld [vmem:[%s1 + $0x10] sm:$0xff]
  %v1006 = vld [vmem:[%s1 + $0x18] sm:$0xff]
  %v1007 = vld [vmem:[%s1 + $0x20] sm:$0xff]
  %v1008 = vld [vmem:[%s1 + $0x28] sm:$0xff]
  %v1009 = vld [vmem:[%s1 + $0x30] sm:$0xff]
  %v1010 = vld [vmem:[%s1 + $0x38] sm:$0xff]
  %v1011 = vld [vmem:[%s1 + $0x40] sm:$0xff]
  %v1012 = vld [vmem:[%s1 + $0x48] sm:$0xff]
  %v1013 = vld [vmem:[%s1 + $0x50] sm:$0xff]
  %v1014 = vld [vmem:[%s1 + $0x58] sm:$0xff]
  %v1015 = vld [vmem:[%s1 + $0x60] sm:$0xff]
  %v1016 = vld [vmem:[%s1 + $0x68] sm:$0xff]
  %v1017 = vld [vmem:[%s1 + $0x70] sm:$0xff]
  %v1018 = vld [vmem:[%s1 + $0x78] sm:$0xff]
  %1019 = vmatprep.subr.mxu0 0.0
  %1020 = vmatpush1.msra.mxu0 %v1003
  %1021 = vmatprep.subr.mxu0 0.0
  %1022 = vmatpush1.msra.mxu0 %v1004
  %1023 = vmatprep.subr.mxu0 0.0
  %1024 = vmatpush1.msra.mxu0 %v1005
  %1025 = vmatprep.subr.mxu0 0.0
  %1026 = vmatpush1.msra.mxu0 %v1006
  %1027 = vmatprep.subr.mxu0 0.0
  %1028 = vmatpush1.msra.mxu0 %v1007
  %1029 = vmatprep.subr.mxu0 0.0
  %1030 = vmatpush1.msra.mxu0 %v1008
  %1031 = vmatprep.subr.mxu0 0.0
  %1032 = vmatpush1.msra.mxu0 %v1009
  %1033 = vmatprep.subr.mxu0 0.0
  %1034 = vmatpush1.msra.mxu0 %v1010
  %1035 = vmatprep.subr.mxu0 0.0
  %1036 = vmatpush1.msra.mxu0 %v1011
  %1037 = vmatprep.subr.mxu0 0.0
  %1038 = vmatpush1.msra.mxu0 %v1012
  %1039 = vmatprep.subr.mxu0 0.0
  %1040 = vmatpush1.msra.mxu0 %v1013
  %1041 = vmatprep.subr.mxu0 0.0
  %1042 = vmatpush1.msra.mxu0 %v1014
  %1043 = vmatprep.subr.mxu0 0.0
  %1044 = vmatpush1.msra.mxu0 %v1015
  %1045 = vmatprep.subr.mxu0 0.0
  %1046 = vmatpush1.msra.mxu0 %v1016
  %1047 = vmatprep.subr.mxu0 0.0
  %1048 = vmatpush1.msra.mxu0 %v1017
  %1049 = vmatprep.subr.mxu0 0.0
  %1050 = vmatpush1.msra.mxu0 %v1018
  %1051 = vmatprep.subr.mxu0 0.0
  %1052 = vmatpush1.msra.mxu0 0.0
  %1053 = vmatprep.subr.mxu0 0.0
  %1054 = vmatpush1.msra.mxu0 0.0
  %1055 = vmatprep.subr.mxu0 0.0
  %1056 = vmatpush1.msra.mxu0 0.0
  %1057 = vmatprep.subr.mxu0 0.0
  %1058 = vmatpush1.msra.mxu0 0.0
  %1059 = vmatprep.subr.mxu0 0.0
  %1060 = vmatpush1.msra.mxu0 0.0
  %1061 = vmatprep.subr.mxu0 0.0
  %1062 = vmatpush1.msra.mxu0 0.0
  %1063 = vmatprep.subr.mxu0 0.0
  %1064 = vmatpush1.msra.mxu0 0.0
  %1065 = vmatprep.subr.mxu0 0.0
  %1066 = vmatpush1.msra.mxu0 0.0
  %1067 = vmatprep.subr.mxu0 0.0
  %1068 = vmatpush1.msra.mxu0 0.0
  %1069 = vmatprep.subr.mxu0 0.0
  %1070 = vmatpush1.msra.mxu0 0.0
  %1071 = vmatprep.subr.mxu0 0.0
  %1072 = vmatpush1.msra.mxu0 0.0
  %1073 = vmatprep.subr.mxu0 0.0
  %1074 = vmatpush1.msra.mxu0 0.0
  %1075 = vmatprep.subr.mxu0 0.0
  %1076 = vmatpush1.msra.mxu0 0.0
  %1077 = vmatprep.subr.mxu0 0.0
  %1078 = vmatpush1.msra.mxu0 0.0
  %1079 = vmatprep.subr.mxu0 0.0
  %1080 = vmatpush1.msra.mxu0 0.0
  %1081 = vmatprep.subr.mxu0 0.0
  %1082 = vmatpush1.msra.mxu0 0.0
  %1083 = vmatprep.mubr.f32.mxu0 0.0
  %1084 = vmatmul.mubr.f32.gmra.mrb[0].mxu0 %v999
  %v1085 = vpop.f32.mrb[0].mxu0
  %v1086 = vadd.f32 0.0, %v1085
  %v1087 = vpop.f32.mrb[0].mxu0
  %1088 = vmatprep.mubr.f32.mxu0 0.0
  %1089 = vmatmul.mubr.f32.gmra.mrb[0].mxu0 %v1000
  %v1090 = vpop.f32.mrb[0].mxu0
  %v1091 = vadd.f32 0.0, %v1090
  %v1092 = vpop.f32.mrb[0].mxu0
  %1093 = vmatprep.mubr.f32.mxu0 0.0
  %1094 = vmatmul.mubr.f32.gmra.mrb[0].mxu0 %v1001
  %v1095 = vpop.f32.mrb[0].mxu0
  %v1096 = vadd.f32 0.0, %v1095
  %v1097 = vpop.f32.mrb[0].mxu0
  %1098 = vmatprep.mubr.f32.mxu0 0.0
  %1099 = vmatmul.mubr.f32.gmra.mrb[0].mxu0 %v1002
  %v1100 = vpop.f32.mrb[0].mxu0
  %v1101 = vadd.f32 0.0, %v1100
  %v1102 = vpop.f32.mrb[0].mxu0
  %1103 = vdwg.mxu0
  %s1104 = scalar_lea.vmem %s3, 48
  %v1105 = vld [vmem:[%s1104] sm:$0xf]
  %v1106 = vld [vmem:[%s1104 + $0x4] sm:$0xf]
  %v1107 = vld [vmem:[%s1104 + $0x8] sm:$0xf]
  %v1108 = vld [vmem:[%s1104 + $0xc] sm:$0xf]
  %v1109 = vunpack.c.l.bf16 %v1105
  %v1110 = vunpack.c.l.bf16 %v1106
  %v1111 = vunpack.c.l.bf16 %v1107
  %v1112 = vunpack.c.l.bf16 %v1108
  %1113 = vset.pattern.permute.xlu0 12
  %1114 = vperm.xlu0 %1113, %v26
  %v1115 = vpop.permute.xlu0 %1114
  %1117 = vset.pattern.permute.xlu0 12
  %1118 = vperm.xlu0 %1117, %v27
  %v1119 = vpop.permute.xlu0 %1118
  %1121 = vset.pattern.permute.xlu0 12
  %1122 = vperm.xlu0 %1121, %v28
  %v1123 = vpop.permute.xlu0 %1122
  %1125 = vset.pattern.permute.xlu0 12
  %1126 = vperm.xlu0 %1125, %v29
  %v1127 = vpop.permute.xlu0 %1126
  %v1130 = vsel %vm214, %v1109, 0
  %v1133 = vsel %vm214, %v1110, 0
  %v1136 = vsel %vm214, %v1111, 0
  %v1139 = vsel %vm214, %v1112, 0
  %1141 = vmatprep.subr.mxu0 0.0
  %1142 = vmatpush1.msra.mxu0 %v1086
  %1143 = vmatprep.subr.mxu0 0.0
  %1144 = vmatpush1.msra.mxu0 %v1091
  %1145 = vmatprep.subr.mxu0 0.0
  %1146 = vmatpush1.msra.mxu0 %v1096
  %1147 = vmatprep.subr.mxu0 0.0
  %1148 = vmatpush1.msra.mxu0 %v1101
  %1149 = vmatprep.subr.mxu0 0.0
  %1150 = vmatpush1.msra.mxu0 0.0
  %1151 = vmatprep.subr.mxu0 0.0
  %1152 = vmatpush1.msra.mxu0 0.0
  %1153 = vmatprep.subr.mxu0 0.0
  %1154 = vmatpush1.msra.mxu0 0.0
  %1155 = vmatprep.subr.mxu0 0.0
  %1156 = vmatpush1.msra.mxu0 0.0
  %1157 = vmatprep.subr.mxu0 0.0
  %1158 = vmatpush1.msra.mxu0 0.0
  %1159 = vmatprep.subr.mxu0 0.0
  %1160 = vmatpush1.msra.mxu0 0.0
  %1161 = vmatprep.subr.mxu0 0.0
  %1162 = vmatpush1.msra.mxu0 0.0
  %1163 = vmatprep.subr.mxu0 0.0
  %1164 = vmatpush1.msra.mxu0 0.0
  %1165 = vmatprep.subr.mxu0 0.0
  %1166 = vmatpush1.msra.mxu0 0.0
  %1167 = vmatprep.subr.mxu0 0.0
  %1168 = vmatpush1.msra.mxu0 0.0
  %1169 = vmatprep.subr.mxu0 0.0
  %1170 = vmatpush1.msra.mxu0 0.0
  %1171 = vmatprep.subr.mxu0 0.0
  %1172 = vmatpush1.msra.mxu0 0.0
  %1173 = vmatprep.subr.mxu0 0.0
  %1174 = vmatpush1.msra.mxu0 0.0
  %1175 = vmatprep.subr.mxu0 0.0
  %1176 = vmatpush1.msra.mxu0 0.0
  %1177 = vmatprep.subr.mxu0 0.0
  %1178 = vmatpush1.msra.mxu0 0.0
  %1179 = vmatprep.subr.mxu0 0.0
  %1180 = vmatpush1.msra.mxu0 0.0
  %1181 = vmatprep.subr.mxu0 0.0
  %1182 = vmatpush1.msra.mxu0 0.0
  %1183 = vmatprep.subr.mxu0 0.0
  %1184 = vmatpush1.msra.mxu0 0.0
  %1185 = vmatprep.subr.mxu0 0.0
  %1186 = vmatpush1.msra.mxu0 0.0
  %1187 = vmatprep.subr.mxu0 0.0
  %1188 = vmatpush1.msra.mxu0 0.0
  %1189 = vmatprep.subr.mxu0 0.0
  %1190 = vmatpush1.msra.mxu0 0.0
  %1191 = vmatprep.subr.mxu0 0.0
  %1192 = vmatpush1.msra.mxu0 0.0
  %1193 = vmatprep.subr.mxu0 0.0
  %1194 = vmatpush1.msra.mxu0 0.0
  %1195 = vmatprep.subr.mxu0 0.0
  %1196 = vmatpush1.msra.mxu0 0.0
  %1197 = vmatprep.subr.mxu0 0.0
  %1198 = vmatpush1.msra.mxu0 0.0
  %1199 = vmatprep.subr.mxu0 0.0
  %1200 = vmatpush1.msra.mxu0 0.0
  %1201 = vmatprep.subr.mxu0 0.0
  %1202 = vmatpush1.msra.mxu0 0.0
  %1203 = vmatprep.subr.mxu0 0.0
  %1204 = vmatpush1.msra.mxu0 0.0
  %1205 = vmatprep.mubr.f32.mxu0 0.0
  %1206 = vmatmul.mubr.f32.gmra.mrb[0].mxu0 %v1130
  %v1207 = vpop.f32.mrb[0].mxu0
  %v1208 = vadd.f32 %v1115, %v1207
  %v1209 = vpop.f32.mrb[0].mxu0
  %1210 = vmatprep.mubr.f32.mxu0 0.0
  %1211 = vmatmul.mubr.f32.gmra.mrb[0].mxu0 %v1133
  %v1212 = vpop.f32.mrb[0].mxu0
  %v1213 = vadd.f32 %v1119, %v1212
  %v1214 = vpop.f32.mrb[0].mxu0
  %1215 = vmatprep.mubr.f32.mxu0 0.0
  %1216 = vmatmul.mubr.f32.gmra.mrb[0].mxu0 %v1136
  %v1217 = vpop.f32.mrb[0].mxu0
  %v1218 = vadd.f32 %v1123, %v1217
  %v1219 = vpop.f32.mrb[0].mxu0
  %1220 = vmatprep.mubr.f32.mxu0 0.0
  %1221 = vmatmul.mubr.f32.gmra.mrb[0].mxu0 %v1139
  %v1222 = vpop.f32.mrb[0].mxu0
  %v1223 = vadd.f32 %v1127, %v1222
  %v1224 = vpop.f32.mrb[0].mxu0
  %1225 = vdwg.mxu0
  %v1226 = vmax.f32 %v1208, 0.0
  %v1227 = vmax.f32 %v1213, 0.0
  %v1228 = vmax.f32 %v1218, 0.0
  %v1229 = vmax.f32 %v1223, 0.0
  %s1230 = scalar_lea.vmem %s3, 64
  %v1231 = vld [vmem:[%s1230] sm:$0xf]
  %v1232 = vld [vmem:[%s1230 + $0x4] sm:$0xf]
  %v1233 = vld [vmem:[%s1230 + $0x8] sm:$0xf]
  %v1234 = vld [vmem:[%s1230 + $0xc] sm:$0xf]
  %v1235 = vunpack.c.l.bf16 %v1231
  %v1236 = vunpack.c.l.bf16 %v1232
  %v1237 = vunpack.c.l.bf16 %v1233
  %v1238 = vunpack.c.l.bf16 %v1234
  %1239 = vset.pattern.permute.xlu0 13
  %1240 = vperm.xlu0 %1239, %v26
  %v1241 = vpop.permute.xlu0 %1240
  %1243 = vset.pattern.permute.xlu0 13
  %1244 = vperm.xlu0 %1243, %v27
  %v1245 = vpop.permute.xlu0 %1244
  %1247 = vset.pattern.permute.xlu0 13
  %1248 = vperm.xlu0 %1247, %v28
  %v1249 = vpop.permute.xlu0 %1248
  %1251 = vset.pattern.permute.xlu0 13
  %1252 = vperm.xlu0 %1251, %v29
  %v1253 = vpop.permute.xlu0 %1252
  %v1256 = vsel %vm214, %v1235, 0
  %v1259 = vsel %vm214, %v1236, 0
  %v1262 = vsel %vm214, %v1237, 0
  %v1265 = vsel %vm214, %v1238, 0
  %1267 = vmatprep.subr.mxu0 0.0
  %1268 = vmatpush1.msra.mxu0 %v1226
  %1269 = vmatprep.subr.mxu0 0.0
  %1270 = vmatpush1.msra.mxu0 %v1227
  %1271 = vmatprep.subr.mxu0 0.0
  %1272 = vmatpush1.msra.mxu0 %v1228
  %1273 = vmatprep.subr.mxu0 0.0
  %1274 = vmatpush1.msra.mxu0 %v1229
  %1275 = vmatprep.subr.mxu0 0.0
  %1276 = vmatpush1.msra.mxu0 0.0
  %1277 = vmatprep.subr.mxu0 0.0
  %1278 = vmatpush1.msra.mxu0 0.0
  %1279 = vmatprep.subr.mxu0 0.0
  %1280 = vmatpush1.msra.mxu0 0.0
  %1281 = vmatprep.subr.mxu0 0.0
  %1282 = vmatpush1.msra.mxu0 0.0
  %1283 = vmatprep.subr.mxu0 0.0
  %1284 = vmatpush1.msra.mxu0 0.0
  %1285 = vmatprep.subr.mxu0 0.0
  %1286 = vmatpush1.msra.mxu0 0.0
  %1287 = vmatprep.subr.mxu0 0.0
  %1288 = vmatpush1.msra.mxu0 0.0
  %1289 = vmatprep.subr.mxu0 0.0
  %1290 = vmatpush1.msra.mxu0 0.0
  %1291 = vmatprep.subr.mxu0 0.0
  %1292 = vmatpush1.msra.mxu0 0.0
  %1293 = vmatprep.subr.mxu0 0.0
  %1294 = vmatpush1.msra.mxu0 0.0
  %1295 = vmatprep.subr.mxu0 0.0
  %1296 = vmatpush1.msra.mxu0 0.0
  %1297 = vmatprep.subr.mxu0 0.0
  %1298 = vmatpush1.msra.mxu0 0.0
  %1299 = vmatprep.subr.mxu0 0.0
  %1300 = vmatpush1.msra.mxu0 0.0
  %1301 = vmatprep.subr.mxu0 0.0
  %1302 = vmatpush1.msra.mxu0 0.0
  %1303 = vmatprep.subr.mxu0 0.0
  %1304 = vmatpush1.msra.mxu0 0.0
  %1305 = vmatprep.subr.mxu0 0.0
  %1306 = vmatpush1.msra.mxu0 0.0
  %1307 = vmatprep.subr.mxu0 0.0
  %1308 = vmatpush1.msra.mxu0 0.0
  %1309 = vmatprep.subr.mxu0 0.0
  %1310 = vmatpush1.msra.mxu0 0.0
  %1311 = vmatprep.subr.mxu0 0.0
  %1312 = vmatpush1.msra.mxu0 0.0
  %1313 = vmatprep.subr.mxu0 0.0
  %1314 = vmatpush1.msra.mxu0 0.0
  %1315 = vmatprep.subr.mxu0 0.0
  %1316 = vmatpush1.msra.mxu0 0.0
  %1317 = vmatprep.subr.mxu0 0.0
  %1318 = vmatpush1.msra.mxu0 0.0
  %1319 = vmatprep.subr.mxu0 0.0
  %1320 = vmatpush1.msra.mxu0 0.0
  %1321 = vmatprep.subr.mxu0 0.0
  %1322 = vmatpush1.msra.mxu0 0.0
  %1323 = vmatprep.subr.mxu0 0.0
  %1324 = vmatpush1.msra.mxu0 0.0
  %1325 = vmatprep.subr.mxu0 0.0
  %1326 = vmatpush1.msra.mxu0 0.0
  %1327 = vmatprep.subr.mxu0 0.0
  %1328 = vmatpush1.msra.mxu0 0.0
  %1329 = vmatprep.subr.mxu0 0.0
  %1330 = vmatpush1.msra.mxu0 0.0
  %1331 = vmatprep.mubr.f32.mxu0 0.0
  %1332 = vmatmul.mubr.f32.gmra.mrb[0].mxu0 %v1256
  %v1333 = vpop.f32.mrb[0].mxu0
  %v1334 = vadd.f32 %v1241, %v1333
  %v1335 = vpop.f32.mrb[0].mxu0
  %1336 = vmatprep.mubr.f32.mxu0 0.0
  %1337 = vmatmul.mubr.f32.gmra.mrb[0].mxu0 %v1259
  %v1338 = vpop.f32.mrb[0].mxu0
  %v1339 = vadd.f32 %v1245, %v1338
  %v1340 = vpop.f32.mrb[0].mxu0
  %1341 = vmatprep.mubr.f32.mxu0 0.0
  %1342 = vmatmul.mubr.f32.gmra.mrb[0].mxu0 %v1262
  %v1343 = vpop.f32.mrb[0].mxu0
  %v1344 = vadd.f32 %v1249, %v1343
  %v1345 = vpop.f32.mrb[0].mxu0
  %1346 = vmatprep.mubr.f32.mxu0 0.0
  %1347 = vmatmul.mubr.f32.gmra.mrb[0].mxu0 %v1265
  %v1348 = vpop.f32.mrb[0].mxu0
  %v1349 = vadd.f32 %v1253, %v1348
  %v1350 = vpop.f32.mrb[0].mxu0
  %1351 = vdwg.mxu0
  %v1352 = vlaneseq
  %v1353 = vshrl.u32 %v1352, 7
  %v1354 = vadd.s32 %v1353, 8
  %v1355 = vadd.s32 %v1353, 16
  %v1356 = vadd.s32 %v1353, 24
  %vm1357 = vcmp.lt.s32.totalorder %v1353, 4
  %vm1358 = vcmp.lt.s32.totalorder %v1354, 4
  %vm1359 = vcmp.lt.s32.totalorder %v1355, 4
  %vm1360 = vcmp.lt.s32.totalorder %v1356, 4
  %v1361 = vsel %vm1357, 1, 0
  %v1362 = vsel %vm1358, 1, 0
  %v1363 = vsel %vm1359, 1, 0
  %v1364 = vsel %vm1360, 1, 0
  %vm1365 = vcmp.eq.s32.totalorder %v1361, 1
  %vm1366 = vcmp.eq.s32.totalorder %v1362, 1
  %vm1367 = vcmp.eq.s32.totalorder %v1363, 1
  %vm1368 = vcmp.eq.s32.totalorder %v1364, 1
  %v1369 = vsel %vm1365, %v1334, -1e+30
  %v1370 = vsel %vm1366, %v1339, -1e+30
  %v1371 = vsel %vm1367, %v1344, -1e+30
  %v1372 = vsel %vm1368, %v1349, -1e+30
  %vm1373 = vcmask 15360
  %v1374 = vsel %vm1373, %v1369, -inf
  %v1375 = vsel %vm1373, %v1370, -inf
  %v1376 = vsel %vm1373, %v1371, -inf
  %v1377 = vsel %vm1373, %v1372, -inf
  %v1378 = vmax.f32 %v1374, %v1375
  %v1379 = vmax.f32 %v1376, %v1377
  %v1380 = vmax.f32 %v1378, %v1379
  %v1381 = vrot.slane %v1380, 4
  %v1382 = vmax.f32 %v1380, %v1381
  %v1383 = vrot.slane %v1382, 2
  %v1384 = vmax.f32 %v1382, %v1383
  %v1385 = vrot.slane %v1384, 1
  %v1386 = vmax.f32 %v1384, %v1385
  %v1387 = vsub.f32 %v1369, %v1386
  %v1388 = vsub.f32 %v1370, %v1386
  %v1389 = vsub.f32 %v1371, %v1386
  %v1390 = vsub.f32 %v1372, %v1386
  %v1391 = vmul.f32 %v1387, 1.442695
  %v1392 = vpow.pop %v1391
  %v1393 = vmul.f32 %v1388, 1.442695
  %v1394 = vpow.pop %v1393
  %v1395 = vmul.f32 %v1389, 1.442695
  %v1396 = vpow.pop %v1395
  %v1397 = vmul.f32 %v1390, 1.442695
  %v1398 = vpow.pop %v1397
  %v1399 = vsel %vm1373, %v1392, 0.0
  %v1400 = vsel %vm1373, %v1394, 0.0
  %v1401 = vadd.f32 %v1399, %v1400
  %v1402 = vsel %vm1373, %v1396, 0.0
  %v1403 = vadd.f32 %v1401, %v1402
  %v1404 = vsel %vm1373, %v1398, 0.0
  %v1405 = vadd.f32 %v1403, %v1404
  %v1406 = vrot.slane %v1405, 4
  %v1407 = vadd.f32 %v1405, %v1406
  %v1408 = vrot.slane %v1407, 2
  %v1409 = vadd.f32 %v1407, %v1408
  %v1410 = vrot.slane %v1409, 1
  %v1411 = vadd.f32 %v1409, %v1410
  %v1412 = vrcp.pop %v1411
  %v1413 = vmul.f32 %v1392, %v1412
  %v1414 = vmul.f32 %v1394, %v1412
  %v1415 = vmul.f32 %v1396, %v1412
  %v1416 = vmul.f32 %v1398, %v1412
  %1417 = vst.msk [vmem:[%s5] sm:$0xff] %vm1373, %v1413
  %1418 = vst.msk [vmem:[%s5 + $0x8] sm:$0xff] %vm1373, %v1414
  %1419 = vst.msk [vmem:[%s5 + $0x10] sm:$0xff] %vm1373, %v1415
  %1420 = vst.msk [vmem:[%s5 + $0x18] sm:$0xff] %vm1373, %v1416
  // Predicated region
  $region22: #{gcn_forward.1} parent=0 // pred_check
    _
  $region23: #{gcn_forward.1} parent=0 // pred_check_branch
    %1422 = sbr.rel (0) target = $region25
  $region24: #{gcn_forward.1} parent=0 // pred_region
    _
  $region25: #{gcn_forward.1} parent=0 // pred_fallthru
    _
  // Predicated region
  $region26: #{gcn_forward.1} parent=0 // pred_check
    _
  $region27: #{gcn_forward.1} parent=0 // pred_check_branch
    %1424 = sbr.rel (0) target = $region29
  $region28: #{gcn_forward.1} parent=0 // pred_region
    _
  $region29: #{gcn_forward.1} parent=0 // pred_fallthru
    _

</llo_original>
